<compile_context>
chip_gen: v5e
topology: v5e:2x2
jax: 0.10.0
libtpu: 0.0.40
codegen_flags: <defaults>
</compile_context>

<pallas_src>
import functools

import numpy as np
import jax
import jax.numpy as jnp
from jax.experimental import pallas as pl
from jax.experimental.pallas import tpu as pltpu


# ----------------------------- fused Pallas kernel ---------------------------

def _fused_ae_kernel(x_ref, wb1_ref, b1_ref, wb2_ref, b2_ref, wb3_ref, b3_ref,
                     wb4_ref, b4_ref, pw_ref, ph_ref, uw_ref, uh_ref,
                     pred_ref, feat_ref, loss_ref):
    """Conv-AE forward + BCE partial sum for ONE batch element (grid over B).

    x_ref    : (1, H, W*Cin)     image; rows = y, lanes = x*Cin + c
    wb*_ref  : (3, W*Ci, W*Co)   banded per-ky conv weights (kx taps + W zero-pad in the band)
    b*_ref   : (1, W*Co)         biases tiled across x in the lane dim
    pw_ref   : (W*Ch, W2*Ch)     2x2 avg-pool, W direction (0.25 folded in)
    ph_ref   : (H2, H)           2x2 avg-pool, H row-pair sum
    uw_ref   : (W2*Cf, W*Cf)     nearest upsample, W direction
    uh_ref   : (H, H2)           nearest upsample, H row duplication
    pred_ref : (1, H, W*Cin)     sigmoid output
    feat_ref : (1, H2, W2*Cf)    encoder feature
    loss_ref : (1, 1, 128)       per-batch BCE *sum* (scalar broadcast across lanes)
    """
    f32 = jnp.float32
    H = x_ref.shape[1]
    H2 = ph_ref.shape[0]

    def shift_mats(r):
        # sd @ p == p shifted down one row (row 0 -> 0); su @ p == shifted up (last row -> 0).
        row = jax.lax.broadcasted_iota(jnp.int32, (r, r), 0)
        col = jax.lax.broadcasted_iota(jnp.int32, (r, r), 1)
        return ((col == row - 1).astype(f32), (col == row + 1).astype(f32))

    sd_h, su_h = shift_mats(H)
    sd_h2, su_h2 = shift_mats(H2)

    def conv3x3(x, wb_ref, b_ref, sd, su):
        # out[y] = x[y-1] @ Wb[0] + x[y] @ Wb[1] + x[y+1] @ Wb[2] + bias
        p0 = jnp.dot(x, wb_ref[0], preferred_element_type=f32)
        p1 = jnp.dot(x, wb_ref[1], preferred_element_type=f32)
        p2 = jnp.dot(x, wb_ref[2], preferred_element_type=f32)
        return (p1
                + jnp.dot(sd, p0, preferred_element_type=f32)
                + jnp.dot(su, p2, preferred_element_type=f32)
                + b_ref[...])

    x = x_ref[0]                                                      # (H, W*Cin)

    # ------------------------------ encoder --------------------------------
    y1 = jnp.maximum(conv3x3(x, wb1_ref, b1_ref, sd_h, su_h), 0.0)    # (H, W*Ch)
    wp = jnp.dot(y1, pw_ref[...], preferred_element_type=f32)         # (H, W2*Ch)
    pooled = jnp.dot(ph_ref[...], wp, preferred_element_type=f32)     # (H2, W2*Ch)
    feat = jnp.maximum(conv3x3(pooled, wb2_ref, b2_ref, sd_h2, su_h2), 0.0)
    feat_ref[0] = feat.astype(feat_ref.dtype)                         # (H2, W2*Cf)

    # ------------------------------ decoder --------------------------------
    wu = jnp.dot(feat, uw_ref[...], preferred_element_type=f32)       # (H2, W*Cf)
    up = jnp.dot(uh_ref[...], wu, preferred_element_type=f32)         # (H, W*Cf)
    d1 = jnp.maximum(conv3x3(up, wb3_ref, b3_ref, sd_h, su_h), 0.0)   # (H, W*Ch)
    z = conv3x3(d1, wb4_ref, b4_ref, sd_h, su_h)                      # (H, W*Cin) logits
    pred_ref[0] = jax.nn.sigmoid(z).astype(pred_ref.dtype)

    # ------- BCE from logits (matches nn.BCELoss's -100 log clamp) ---------
    lse = jnp.log1p(jnp.exp(-jnp.abs(z)))
    neg_log_p = jnp.minimum(jnp.maximum(-z, 0.0) + lse, 100.0)        # -log(sigmoid(z))
    neg_log_1mp = jnp.minimum(jnp.maximum(z, 0.0) + lse, 100.0)       # -log(1-sigmoid(z))
    per_elem = x * neg_log_p + (1.0 - x) * neg_log_1mp
    loss_ref[0] = jnp.sum(per_elem) * jnp.ones((1, 128), f32)


# ------------------------------- constant prep --------------------------------

def _banded_weights(w, wd):
    """(3,3,Cin,Cout) HWIO conv kernel -> (3, wd*Cin, wd*Cout) per-ky banded mats."""
    kx = np.arange(3)[:, None, None]
    xi = np.arange(wd)[None, :, None]
    xo = np.arange(wd)[None, None, :]
    sel = (xi == xo + kx - 1).astype(np.float32)            # (3, wd, wd) band (SAME pad)
    cin, cout = w.shape[2], w.shape[3]
    wb = jnp.einsum("xab,yxio->yaibo", sel, w)               # (3, wd, cin, wd, cout)
    return wb.reshape(3, wd * cin, wd * cout)


@functools.lru_cache(maxsize=None)
def _pool_up_mats(H, W, Ch, Cf):
    """Factored 2x2 avg-pool / nearest-upsample constants: O(W^2 + H^2) bytes."""
    H2, W2 = H // 2, W // 2
    xs = np.arange(W)
    pw = np.zeros((W * Ch, W2 * Ch), np.float32)             # W pooling (0.25 folded in)
    for c in range(Ch):
        pw[xs * Ch + c, (xs // 2) * Ch + c] = 0.25
    ph = np.zeros((H2, H), np.float32)                       # H row-pair sum
    ph[np.arange(H) // 2, np.arange(H)] = 1.0
    uw = np.zeros((W2 * Cf, W * Cf), np.float32)             # W nearest upsample
    for c in range(Cf):
        uw[(xs // 2) * Cf + c, xs * Cf + c] = 1.0
    uh = np.zeros((H, H2), np.float32)                       # H row duplication
    uh[np.arange(H), np.arange(H) // 2] = 1.0
    return pw, ph, uw, uh


# ------------------------------- wrapper --------------------------------------

def composite_model_forward(params, image_nchw):
    """CompositeModel.forward: {'loss', 'predict', 'feature'} (NCHW outputs)."""
    x_nhwc = jnp.transpose(image_nchw, (0, 2, 3, 1)).astype(jnp.float32)
    B, H, W, Cin = x_nhwc.shape
    w1, b1 = params["enc1"]
    w2, b2 = params["enc2"]
    w3, b3 = params["dec1"]
    w4, b4 = params["dec2"]
    Ch, Cf = w1.shape[-1], w2.shape[-1]
    H2, W2 = H // 2, W // 2

    # Lane-dense layout: rows = (b, y), lanes = x*C + c.
    x2d = x_nhwc.reshape(B, H, W * Cin)

    # Wrapper-side weight prep (tiny): banded per-ky matrices + lane-tiled biases.
    wb1 = _banded_weights(w1, W)            # (3, W*Cin, W*Ch)
    wb2 = _banded_weights(w2, W2)           # (3, W2*Ch, W2*Cf)
    wb3 = _banded_weights(w3, W)            # (3, W*Cf,  W*Ch)
    wb4 = _banded_weights(w4, W)            # (3, W*Ch,  W*Cin)
    b1t = jnp.tile(b1, W).reshape(1, W * Ch)
    b2t = jnp.tile(b2, W2).reshape(1, W2 * Cf)
    b3t = jnp.tile(b3, W).reshape(1, W * Ch)
    b4t = jnp.tile(b4, W).reshape(1, W * Cin)
    pw, ph, uw, uh = _pool_up_mats(H, W, Ch, Cf)

    const_spec3 = lambda shape: pl.BlockSpec(shape, lambda b: (0, 0, 0))
    const_spec2 = lambda shape: pl.BlockSpec(shape, lambda b: (0, 0))

    pred3d, feat3d, loss_parts = pl.pallas_call(
        _fused_ae_kernel,
        grid=(B,),
        in_specs=[
            pl.BlockSpec((1, H, W * Cin), lambda b: (b, 0, 0)),   # image (per batch)
            const_spec3(wb1.shape), const_spec2(b1t.shape),
            const_spec3(wb2.shape), const_spec2(b2t.shape),
            const_spec3(wb3.shape), const_spec2(b3t.shape),
            const_spec3(wb4.shape), const_spec2(b4t.shape),
            const_spec2(pw.shape), const_spec2(ph.shape),
            const_spec2(uw.shape), const_spec2(uh.shape),
        ],
        out_specs=(
            pl.BlockSpec((1, H, W * Cin), lambda b: (b, 0, 0)),
            pl.BlockSpec((1, H2, W2 * Cf), lambda b: (b, 0, 0)),
            pl.BlockSpec((1, 1, 128), lambda b: (b, 0, 0)),
        ),
        out_shape=(
            jax.ShapeDtypeStruct((B, H, W * Cin), jnp.float32),
            jax.ShapeDtypeStruct((B, H2, W2 * Cf), jnp.float32),
            jax.ShapeDtypeStruct((B, 1, 128), jnp.float32),
        ),
        compiler_params=pltpu.CompilerParams(
            dimension_semantics=("parallel",)),
    )(x2d, wb1, b1t, wb2, b2t, wb3, b3t, wb4, b4t, pw, ph, uw, uh)

    pred = pred3d.reshape(B, H, W, Cin)
    feat = feat3d.reshape(B, H2, W2, Cf)
    loss = jnp.sum(loss_parts[:, 0, 0]) / (B * H * W * Cin)
    return {
        "loss": loss,
        "predict": jnp.transpose(pred, (0, 3, 1, 2)),   # back to NCHW
        "feature": jnp.transpose(feat, (0, 3, 1, 2)),
    }


# --------------------------- model parameters --------------------------------

def init_params(key, in_channels=4, hidden_channels=8, feature_channels=4):
    """Deterministic synthetic parameter init (shapes follow a small conv AE)."""
    ks = jax.random.split(key, 8)

    def conv_p(kw, kb, cin, cout):
        w = jax.random.normal(kw, (3, 3, cin, cout), jnp.float32) / jnp.sqrt(9.0 * cin)
        b = 0.01 * jax.random.normal(kb, (cout,), jnp.float32)
        return w, b

    return {
        "enc1": conv_p(ks[0], ks[1], in_channels, hidden_channels),
        "enc2": conv_p(ks[2], ks[3], hidden_channels, feature_channels),
        "dec1": conv_p(ks[4], ks[5], feature_channels, hidden_channels),
        "dec2": conv_p(ks[6], ks[7], hidden_channels, in_channels),
    }


# ------------------------- pure-JAX reference ---------------------------------

def _reference_forward(params, image_nchw):
    x = jnp.transpose(image_nchw, (0, 2, 3, 1))

    def conv(h, w, b, act):
        y = jax.lax.conv_general_dilated(
            h, w, window_strides=(1, 1), padding="SAME",
            dimension_numbers=("NHWC", "HWIO", "NHWC"),
            precision=jax.lax.Precision.HIGHEST) + b
        return jnp.maximum(y, 0.0) if act == "relu" else jax.nn.sigmoid(y)

    h = conv(x, *params["enc1"], act="relu")
    B, H, W, C = h.shape
    h = h.reshape(B, H // 2, 2, W // 2, 2, C).mean(axis=(2, 4))
    feat = conv(h, *params["enc2"], act="relu")
    u = jnp.repeat(jnp.repeat(feat, 2, axis=1), 2, axis=2)
    d = conv(u, *params["dec1"], act="relu")
    pred = conv(d, *params["dec2"], act="sigmoid")
    log_p = jnp.maximum(jnp.log(pred), -100.0)
    log_1mp = jnp.maximum(jnp.log1p(-pred), -100.0)
    loss = jnp.mean(-(x * log_p + (1.0 - x) * log_1mp))
    return {"loss": loss,
            "predict": jnp.transpose(pred, (0, 3, 1, 2)),
            "feature": jnp.transpose(feat, (0, 3, 1, 2))}


# ----------------------------------- main -------------------------------------

if __name__ == "__main__":
    key = jax.random.PRNGKey(0)
    k_img, k_par = jax.random.split(key)

    B, C, H, W = 2, 4, 16, 16
    # BCE target must be in [0, 1]
    image = jax.random.uniform(k_img, (B, C, H, W), jnp.float32)
    params = init_params(k_par, in_channels=C, hidden_channels=8, feature_channels=4)

    out = jax.jit(composite_model_forward)(params, image)
    jax.block_until_ready(out)

    assert out["predict"].shape == (B, C, H, W)
    assert out["feature"].shape == (B, 4, H // 2, W // 2)
    assert out["loss"].shape == ()

    ref = _reference_forward(params, image)
    assert jnp.allclose(out["predict"], ref["predict"], atol=5e-2, rtol=5e-2)
    assert jnp.allclose(out["feature"], ref["feature"], atol=5e-2, rtol=5e-2)
    assert jnp.abs(out["loss"] - ref["loss"]) < 5e-2

    print("KERNEL_OK")
</pallas_src>

<mosaic_0001>
module attributes {stable_mosaic.version = 11 : i64} {
  func.func @_fused_ae_kernel(%arg0: i32, %arg1: memref<1x16x64xf32, #tpu.memory_space<vmem>>, %arg2: memref<3x64x128xf32, #tpu.memory_space<vmem>>, %arg3: memref<1x128xf32, #tpu.memory_space<vmem>>, %arg4: memref<3x64x32xf32, #tpu.memory_space<vmem>>, %arg5: memref<1x32xf32, #tpu.memory_space<vmem>>, %arg6: memref<3x64x128xf32, #tpu.memory_space<vmem>>, %arg7: memref<1x128xf32, #tpu.memory_space<vmem>>, %arg8: memref<3x128x64xf32, #tpu.memory_space<vmem>>, %arg9: memref<1x64xf32, #tpu.memory_space<vmem>>, %arg10: memref<128x64xf32, #tpu.memory_space<vmem>>, %arg11: memref<8x16xf32, #tpu.memory_space<vmem>>, %arg12: memref<32x64xf32, #tpu.memory_space<vmem>>, %arg13: memref<16x8xf32, #tpu.memory_space<vmem>>, %arg14: memref<1x16x64xf32, #tpu.memory_space<vmem>>, %arg15: memref<1x8x32xf32, #tpu.memory_space<vmem>>, %arg16: memref<1x1x128xf32, #tpu.memory_space<vmem>>) attributes {dimension_semantics = [#tpu.dimension_semantics<parallel>], iteration_bounds = array<i64: 2>, scalar_prefetch = 0 : i64, scratch_operands = 0 : i64, tpu.core_type = #tpu.core_type<tc>, window_params = [{transform_indices = @transform_0, window_bounds = array<i64: 1, 16, 64>}, {pipeline_mode = #tpu.pipeline_mode<synchronous>, transform_indices = @transform_1, window_bounds = array<i64: 3, 64, 128>}, {pipeline_mode = #tpu.pipeline_mode<synchronous>, transform_indices = @transform_2, window_bounds = array<i64: 1, 128>}, {pipeline_mode = #tpu.pipeline_mode<synchronous>, transform_indices = @transform_3, window_bounds = array<i64: 3, 64, 32>}, {pipeline_mode = #tpu.pipeline_mode<synchronous>, transform_indices = @transform_4, window_bounds = array<i64: 1, 32>}, {pipeline_mode = #tpu.pipeline_mode<synchronous>, transform_indices = @transform_5, window_bounds = array<i64: 3, 64, 128>}, {pipeline_mode = #tpu.pipeline_mode<synchronous>, transform_indices = @transform_6, window_bounds = array<i64: 1, 128>}, {pipeline_mode = #tpu.pipeline_mode<synchronous>, transform_indices = @transform_7, window_bounds = array<i64: 3, 128, 64>}, {pipeline_mode = #tpu.pipeline_mode<synchronous>, transform_indices = @transform_8, window_bounds = array<i64: 1, 64>}, {pipeline_mode = #tpu.pipeline_mode<synchronous>, transform_indices = @transform_9, window_bounds = array<i64: 128, 64>}, {pipeline_mode = #tpu.pipeline_mode<synchronous>, transform_indices = @transform_10, window_bounds = array<i64: 8, 16>}, {pipeline_mode = #tpu.pipeline_mode<synchronous>, transform_indices = @transform_11, window_bounds = array<i64: 32, 64>}, {pipeline_mode = #tpu.pipeline_mode<synchronous>, transform_indices = @transform_12, window_bounds = array<i64: 16, 8>}, {transform_indices = @transform_13, window_bounds = array<i64: 1, 16, 64>}, {transform_indices = @transform_14, window_bounds = array<i64: 1, 8, 32>}, {transform_indices = @transform_15, window_bounds = array<i64: 1, 1, 128>}]} {
    %0 = tpu.iota {dimensions = array<i32: 0>} : vector<16x16xi32>
    %1 = tpu.iota {dimensions = array<i32: 1>} : vector<16x16xi32>
    %c1_i32 = arith.constant 1 : i32
    %2 = vector.broadcast %c1_i32 : i32 to vector<16x16xi32>
    %3 = arith.subi %0, %2 : vector<16x16xi32>
    %4 = arith.cmpi eq, %1, %3 : vector<16x16xi32>
    %5 = arith.extui %4 : vector<16x16xi1> to vector<16x16xi32>
    %6 = arith.sitofp %5 : vector<16x16xi32> to vector<16x16xf32>
    %c1_i32_0 = arith.constant 1 : i32
    %7 = vector.broadcast %c1_i32_0 : i32 to vector<16x16xi32>
    %8 = arith.addi %0, %7 : vector<16x16xi32>
    %9 = arith.cmpi eq, %1, %8 : vector<16x16xi32>
    %10 = arith.extui %9 : vector<16x16xi1> to vector<16x16xi32>
    %11 = arith.sitofp %10 : vector<16x16xi32> to vector<16x16xf32>
    %12 = tpu.iota {dimensions = array<i32: 0>} : vector<8x8xi32>
    %13 = tpu.iota {dimensions = array<i32: 1>} : vector<8x8xi32>
    %c1_i32_1 = arith.constant 1 : i32
    %14 = vector.broadcast %c1_i32_1 : i32 to vector<8x8xi32>
    %15 = arith.subi %12, %14 : vector<8x8xi32>
    %16 = arith.cmpi eq, %13, %15 : vector<8x8xi32>
    %17 = arith.extui %16 : vector<8x8xi1> to vector<8x8xi32>
    %18 = arith.sitofp %17 : vector<8x8xi32> to vector<8x8xf32>
    %c1_i32_2 = arith.constant 1 : i32
    %19 = vector.broadcast %c1_i32_2 : i32 to vector<8x8xi32>
    %20 = arith.addi %12, %19 : vector<8x8xi32>
    %21 = arith.cmpi eq, %13, %20 : vector<8x8xi32>
    %22 = arith.extui %21 : vector<8x8xi1> to vector<8x8xi32>
    %23 = arith.sitofp %22 : vector<8x8xi32> to vector<8x8xf32>
    %c0 = arith.constant 0 : index
    %c0_3 = arith.constant 0 : index
    %c0_4 = arith.constant 0 : index
    %24 = vector.load %arg1[%c0, %c0_3, %c0_4] : memref<1x16x64xf32, #tpu.memory_space<vmem>>, vector<1x16x64xf32>
    %25 = vector.shape_cast %24 : vector<1x16x64xf32> to vector<16x64xf32>
    %c0_5 = arith.constant 0 : index
    %c0_6 = arith.constant 0 : index
    %c0_7 = arith.constant 0 : index
    %26 = vector.load %arg2[%c0_5, %c0_6, %c0_7] : memref<3x64x128xf32, #tpu.memory_space<vmem>>, vector<1x64x128xf32>
    %27 = vector.shape_cast %26 : vector<1x64x128xf32> to vector<64x128xf32>
    %cst = arith.constant dense<0.000000e+00> : vector<16x128xf32>
    %28 = tpu.matmul %25, %27, %cst {dimension_numbers = #tpu.dot_dimension_numbers<[1], [0], [0], [1], [0, 0, 1, 1], [], []>} : vector<16x64xf32>, vector<64x128xf32>, vector<16x128xf32> -> vector<16x128xf32>
    %c1 = arith.constant 1 : index
    %c0_8 = arith.constant 0 : index
    %c0_9 = arith.constant 0 : index
    %29 = vector.load %arg2[%c1, %c0_8, %c0_9] : memref<3x64x128xf32, #tpu.memory_space<vmem>>, vector<1x64x128xf32>
    %30 = vector.shape_cast %29 : vector<1x64x128xf32> to vector<64x128xf32>
    %cst_10 = arith.constant dense<0.000000e+00> : vector<16x128xf32>
    %31 = tpu.matmul %25, %30, %cst_10 {dimension_numbers = #tpu.dot_dimension_numbers<[1], [0], [0], [1], [0, 0, 1, 1], [], []>} : vector<16x64xf32>, vector<64x128xf32>, vector<16x128xf32> -> vector<16x128xf32>
    %c2 = arith.constant 2 : index
    %c0_11 = arith.constant 0 : index
    %c0_12 = arith.constant 0 : index
    %32 = vector.load %arg2[%c2, %c0_11, %c0_12] : memref<3x64x128xf32, #tpu.memory_space<vmem>>, vector<1x64x128xf32>
    %33 = vector.shape_cast %32 : vector<1x64x128xf32> to vector<64x128xf32>
    %cst_13 = arith.constant dense<0.000000e+00> : vector<16x128xf32>
    %34 = tpu.matmul %25, %33, %cst_13 {dimension_numbers = #tpu.dot_dimension_numbers<[1], [0], [0], [1], [0, 0, 1, 1], [], []>} : vector<16x64xf32>, vector<64x128xf32>, vector<16x128xf32> -> vector<16x128xf32>
    %cst_14 = arith.constant dense<0.000000e+00> : vector<16x128xf32>
    %35 = tpu.matmul %6, %28, %cst_14 {dimension_numbers = #tpu.dot_dimension_numbers<[1], [0], [0], [1], [0, 0, 1, 1], [], []>} : vector<16x16xf32>, vector<16x128xf32>, vector<16x128xf32> -> vector<16x128xf32>
    %36 = arith.addf %31, %35 : vector<16x128xf32>
    %cst_15 = arith.constant dense<0.000000e+00> : vector<16x128xf32>
    %37 = tpu.matmul %11, %34, %cst_15 {dimension_numbers = #tpu.dot_dimension_numbers<[1], [0], [0], [1], [0, 0, 1, 1], [], []>} : vector<16x16xf32>, vector<16x128xf32>, vector<16x128xf32> -> vector<16x128xf32>
    %38 = arith.addf %36, %37 : vector<16x128xf32>
    %c0_16 = arith.constant 0 : index
    %c0_17 = arith.constant 0 : index
    %39 = vector.load %arg3[%c0_16, %c0_17] : memref<1x128xf32, #tpu.memory_space<vmem>>, vector<1x128xf32>
    %40 = vector.broadcast %39 : vector<1x128xf32> to vector<16x128xf32>
    %41 = arith.addf %38, %40 : vector<16x128xf32>
    %cst_18 = arith.constant 0.000000e+00 : f32
    %42 = vector.broadcast %cst_18 : f32 to vector<16x128xf32>
    %43 = arith.maximumf %41, %42 : vector<16x128xf32>
    %c0_19 = arith.constant 0 : index
    %c0_20 = arith.constant 0 : index
    %44 = vector.load %arg10[%c0_19, %c0_20] : memref<128x64xf32, #tpu.memory_space<vmem>>, vector<128x64xf32>
    %cst_21 = arith.constant dense<0.000000e+00> : vector<16x64xf32>
    %45 = tpu.matmul %43, %44, %cst_21 {dimension_numbers = #tpu.dot_dimension_numbers<[1], [0], [0], [1], [0, 0, 1, 1], [], []>} : vector<16x128xf32>, vector<128x64xf32>, vector<16x64xf32> -> vector<16x64xf32>
    %c0_22 = arith.constant 0 : index
    %c0_23 = arith.constant 0 : index
    %46 = vector.load %arg11[%c0_22, %c0_23] : memref<8x16xf32, #tpu.memory_space<vmem>>, vector<8x16xf32>
    %cst_24 = arith.constant dense<0.000000e+00> : vector<8x64xf32>
    %47 = tpu.matmul %46, %45, %cst_24 {dimension_numbers = #tpu.dot_dimension_numbers<[1], [0], [0], [1], [0, 0, 1, 1], [], []>} : vector<8x16xf32>, vector<16x64xf32>, vector<8x64xf32> -> vector<8x64xf32>
    %c0_25 = arith.constant 0 : index
    %c0_26 = arith.constant 0 : index
    %c0_27 = arith.constant 0 : index
    %48 = vector.load %arg4[%c0_25, %c0_26, %c0_27] : memref<3x64x32xf32, #tpu.memory_space<vmem>>, vector<1x64x32xf32>
    %49 = vector.shape_cast %48 : vector<1x64x32xf32> to vector<64x32xf32>
    %cst_28 = arith.constant dense<0.000000e+00> : vector<8x32xf32>
    %50 = tpu.matmul %47, %49, %cst_28 {dimension_numbers = #tpu.dot_dimension_numbers<[1], [0], [0], [1], [0, 0, 1, 1], [], []>} : vector<8x64xf32>, vector<64x32xf32>, vector<8x32xf32> -> vector<8x32xf32>
    %c1_29 = arith.constant 1 : index
    %c0_30 = arith.constant 0 : index
    %c0_31 = arith.constant 0 : index
    %51 = vector.load %arg4[%c1_29, %c0_30, %c0_31] : memref<3x64x32xf32, #tpu.memory_space<vmem>>, vector<1x64x32xf32>
    %52 = vector.shape_cast %51 : vector<1x64x32xf32> to vector<64x32xf32>
    %cst_32 = arith.constant dense<0.000000e+00> : vector<8x32xf32>
    %53 = tpu.matmul %47, %52, %cst_32 {dimension_numbers = #tpu.dot_dimension_numbers<[1], [0], [0], [1], [0, 0, 1, 1], [], []>} : vector<8x64xf32>, vector<64x32xf32>, vector<8x32xf32> -> vector<8x32xf32>
    %c2_33 = arith.constant 2 : index
    %c0_34 = arith.constant 0 : index
    %c0_35 = arith.constant 0 : index
    %54 = vector.load %arg4[%c2_33, %c0_34, %c0_35] : memref<3x64x32xf32, #tpu.memory_space<vmem>>, vector<1x64x32xf32>
    %55 = vector.shape_cast %54 : vector<1x64x32xf32> to vector<64x32xf32>
    %cst_36 = arith.constant dense<0.000000e+00> : vector<8x32xf32>
    %56 = tpu.matmul %47, %55, %cst_36 {dimension_numbers = #tpu.dot_dimension_numbers<[1], [0], [0], [1], [0, 0, 1, 1], [], []>} : vector<8x64xf32>, vector<64x32xf32>, vector<8x32xf32> -> vector<8x32xf32>
    %cst_37 = arith.constant dense<0.000000e+00> : vector<8x32xf32>
    %57 = tpu.matmul %18, %50, %cst_37 {dimension_numbers = #tpu.dot_dimension_numbers<[1], [0], [0], [1], [0, 0, 1, 1], [], []>} : vector<8x8xf32>, vector<8x32xf32>, vector<8x32xf32> -> vector<8x32xf32>
    %58 = arith.addf %53, %57 : vector<8x32xf32>
    %cst_38 = arith.constant dense<0.000000e+00> : vector<8x32xf32>
    %59 = tpu.matmul %23, %56, %cst_38 {dimension_numbers = #tpu.dot_dimension_numbers<[1], [0], [0], [1], [0, 0, 1, 1], [], []>} : vector<8x8xf32>, vector<8x32xf32>, vector<8x32xf32> -> vector<8x32xf32>
    %60 = arith.addf %58, %59 : vector<8x32xf32>
    %c0_39 = arith.constant 0 : index
    %c0_40 = arith.constant 0 : index
    %61 = vector.load %arg5[%c0_39, %c0_40] : memref<1x32xf32, #tpu.memory_space<vmem>>, vector<1x32xf32>
    %62 = vector.broadcast %61 : vector<1x32xf32> to vector<8x32xf32>
    %63 = arith.addf %60, %62 : vector<8x32xf32>
    %cst_41 = arith.constant 0.000000e+00 : f32
    %64 = vector.broadcast %cst_41 : f32 to vector<8x32xf32>
    %65 = arith.maximumf %63, %64 : vector<8x32xf32>
    %c0_42 = arith.constant 0 : index
    %c0_43 = arith.constant 0 : index
    %c0_44 = arith.constant 0 : index
    %66 = vector.load %arg15[%c0_42, %c0_43, %c0_44] : memref<1x8x32xf32, #tpu.memory_space<vmem>>, vector<1x8x32xf32>
    %67 = vector.shape_cast %66 : vector<1x8x32xf32> to vector<8x32xf32>
    %68 = vector.shape_cast %65 : vector<8x32xf32> to vector<1x8x32xf32>
    tpu.vector_store %arg15[%c0_42, %c0_43, %c0_44], %68 {strides = array<i32>} : memref<1x8x32xf32, #tpu.memory_space<vmem>>, vector<1x8x32xf32>,
    %c0_45 = arith.constant 0 : index
    %c0_46 = arith.constant 0 : index
    %69 = vector.load %arg12[%c0_45, %c0_46] : memref<32x64xf32, #tpu.memory_space<vmem>>, vector<32x64xf32>
    %cst_47 = arith.constant dense<0.000000e+00> : vector<8x64xf32>
    %70 = tpu.matmul %65, %69, %cst_47 {dimension_numbers = #tpu.dot_dimension_numbers<[1], [0], [0], [1], [0, 0, 1, 1], [], []>} : vector<8x32xf32>, vector<32x64xf32>, vector<8x64xf32> -> vector<8x64xf32>
    %c0_48 = arith.constant 0 : index
    %c0_49 = arith.constant 0 : index
    %71 = vector.load %arg13[%c0_48, %c0_49] : memref<16x8xf32, #tpu.memory_space<vmem>>, vector<16x8xf32>
    %cst_50 = arith.constant dense<0.000000e+00> : vector<16x64xf32>
    %72 = tpu.matmul %71, %70, %cst_50 {dimension_numbers = #tpu.dot_dimension_numbers<[1], [0], [0], [1], [0, 0, 1, 1], [], []>} : vector<16x8xf32>, vector<8x64xf32>, vector<16x64xf32> -> vector<16x64xf32>
    %c0_51 = arith.constant 0 : index
    %c0_52 = arith.constant 0 : index
    %c0_53 = arith.constant 0 : index
    %73 = vector.load %arg6[%c0_51, %c0_52, %c0_53] : memref<3x64x128xf32, #tpu.memory_space<vmem>>, vector<1x64x128xf32>
    %74 = vector.shape_cast %73 : vector<1x64x128xf32> to vector<64x128xf32>
    %cst_54 = arith.constant dense<0.000000e+00> : vector<16x128xf32>
    %75 = tpu.matmul %72, %74, %cst_54 {dimension_numbers = #tpu.dot_dimension_numbers<[1], [0], [0], [1], [0, 0, 1, 1], [], []>} : vector<16x64xf32>, vector<64x128xf32>, vector<16x128xf32> -> vector<16x128xf32>
    %c1_55 = arith.constant 1 : index
    %c0_56 = arith.constant 0 : index
    %c0_57 = arith.constant 0 : index
    %76 = vector.load %arg6[%c1_55, %c0_56, %c0_57] : memref<3x64x128xf32, #tpu.memory_space<vmem>>, vector<1x64x128xf32>
    %77 = vector.shape_cast %76 : vector<1x64x128xf32> to vector<64x128xf32>
    %cst_58 = arith.constant dense<0.000000e+00> : vector<16x128xf32>
    %78 = tpu.matmul %72, %77, %cst_58 {dimension_numbers = #tpu.dot_dimension_numbers<[1], [0], [0], [1], [0, 0, 1, 1], [], []>} : vector<16x64xf32>, vector<64x128xf32>, vector<16x128xf32> -> vector<16x128xf32>
    %c2_59 = arith.constant 2 : index
    %c0_60 = arith.constant 0 : index
    %c0_61 = arith.constant 0 : index
    %79 = vector.load %arg6[%c2_59, %c0_60, %c0_61] : memref<3x64x128xf32, #tpu.memory_space<vmem>>, vector<1x64x128xf32>
    %80 = vector.shape_cast %79 : vector<1x64x128xf32> to vector<64x128xf32>
    %cst_62 = arith.constant dense<0.000000e+00> : vector<16x128xf32>
    %81 = tpu.matmul %72, %80, %cst_62 {dimension_numbers = #tpu.dot_dimension_numbers<[1], [0], [0], [1], [0, 0, 1, 1], [], []>} : vector<16x64xf32>, vector<64x128xf32>, vector<16x128xf32> -> vector<16x128xf32>
    %cst_63 = arith.constant dense<0.000000e+00> : vector<16x128xf32>
    %82 = tpu.matmul %6, %75, %cst_63 {dimension_numbers = #tpu.dot_dimension_numbers<[1], [0], [0], [1], [0, 0, 1, 1], [], []>} : vector<16x16xf32>, vector<16x128xf32>, vector<16x128xf32> -> vector<16x128xf32>
    %83 = arith.addf %78, %82 : vector<16x128xf32>
    %cst_64 = arith.constant dense<0.000000e+00> : vector<16x128xf32>
    %84 = tpu.matmul %11, %81, %cst_64 {dimension_numbers = #tpu.dot_dimension_numbers<[1], [0], [0], [1], [0, 0, 1, 1], [], []>} : vector<16x16xf32>, vector<16x128xf32>, vector<16x128xf32> -> vector<16x128xf32>
    %85 = arith.addf %83, %84 : vector<16x128xf32>
    %c0_65 = arith.constant 0 : index
    %c0_66 = arith.constant 0 : index
    %86 = vector.load %arg7[%c0_65, %c0_66] : memref<1x128xf32, #tpu.memory_space<vmem>>, vector<1x128xf32>
    %87 = vector.broadcast %86 : vector<1x128xf32> to vector<16x128xf32>
    %88 = arith.addf %85, %87 : vector<16x128xf32>
    %cst_67 = arith.constant 0.000000e+00 : f32
    %89 = vector.broadcast %cst_67 : f32 to vector<16x128xf32>
    %90 = arith.maximumf %88, %89 : vector<16x128xf32>
    %c0_68 = arith.constant 0 : index
    %c0_69 = arith.constant 0 : index
    %c0_70 = arith.constant 0 : index
    %91 = vector.load %arg8[%c0_68, %c0_69, %c0_70] : memref<3x128x64xf32, #tpu.memory_space<vmem>>, vector<1x128x64xf32>
    %92 = vector.shape_cast %91 : vector<1x128x64xf32> to vector<128x64xf32>
    %cst_71 = arith.constant dense<0.000000e+00> : vector<16x64xf32>
    %93 = tpu.matmul %90, %92, %cst_71 {dimension_numbers = #tpu.dot_dimension_numbers<[1], [0], [0], [1], [0, 0, 1, 1], [], []>} : vector<16x128xf32>, vector<128x64xf32>, vector<16x64xf32> -> vector<16x64xf32>
    %c1_72 = arith.constant 1 : index
    %c0_73 = arith.constant 0 : index
    %c0_74 = arith.constant 0 : index
    %94 = vector.load %arg8[%c1_72, %c0_73, %c0_74] : memref<3x128x64xf32, #tpu.memory_space<vmem>>, vector<1x128x64xf32>
    %95 = vector.shape_cast %94 : vector<1x128x64xf32> to vector<128x64xf32>
    %cst_75 = arith.constant dense<0.000000e+00> : vector<16x64xf32>
    %96 = tpu.matmul %90, %95, %cst_75 {dimension_numbers = #tpu.dot_dimension_numbers<[1], [0], [0], [1], [0, 0, 1, 1], [], []>} : vector<16x128xf32>, vector<128x64xf32>, vector<16x64xf32> -> vector<16x64xf32>
    %c2_76 = arith.constant 2 : index
    %c0_77 = arith.constant 0 : index
    %c0_78 = arith.constant 0 : index
    %97 = vector.load %arg8[%c2_76, %c0_77, %c0_78] : memref<3x128x64xf32, #tpu.memory_space<vmem>>, vector<1x128x64xf32>
    %98 = vector.shape_cast %97 : vector<1x128x64xf32> to vector<128x64xf32>
    %cst_79 = arith.constant dense<0.000000e+00> : vector<16x64xf32>
    %99 = tpu.matmul %90, %98, %cst_79 {dimension_numbers = #tpu.dot_dimension_numbers<[1], [0], [0], [1], [0, 0, 1, 1], [], []>} : vector<16x128xf32>, vector<128x64xf32>, vector<16x64xf32> -> vector<16x64xf32>
    %cst_80 = arith.constant dense<0.000000e+00> : vector<16x64xf32>
    %100 = tpu.matmul %6, %93, %cst_80 {dimension_numbers = #tpu.dot_dimension_numbers<[1], [0], [0], [1], [0, 0, 1, 1], [], []>} : vector<16x16xf32>, vector<16x64xf32>, vector<16x64xf32> -> vector<16x64xf32>
    %101 = arith.addf %96, %100 : vector<16x64xf32>
    %cst_81 = arith.constant dense<0.000000e+00> : vector<16x64xf32>
    %102 = tpu.matmul %11, %99, %cst_81 {dimension_numbers = #tpu.dot_dimension_numbers<[1], [0], [0], [1], [0, 0, 1, 1], [], []>} : vector<16x16xf32>, vector<16x64xf32>, vector<16x64xf32> -> vector<16x64xf32>
    %103 = arith.addf %101, %102 : vector<16x64xf32>
    %c0_82 = arith.constant 0 : index
    %c0_83 = arith.constant 0 : index
    %104 = vector.load %arg9[%c0_82, %c0_83] : memref<1x64xf32, #tpu.memory_space<vmem>>, vector<1x64xf32>
    %105 = vector.broadcast %104 : vector<1x64xf32> to vector<16x64xf32>
    %106 = arith.addf %103, %105 : vector<16x64xf32>
    %107 = arith.negf %106 : vector<16x64xf32>
    %108 = math.exp %107 : vector<16x64xf32>
    %cst_84 = arith.constant 1.000000e+00 : f32
    %109 = vector.broadcast %cst_84 : f32 to vector<16x64xf32>
    %110 = arith.addf %109, %108 : vector<16x64xf32>
    %111 = arith.divf %109, %110 : vector<16x64xf32>
    %c0_85 = arith.constant 0 : index
    %c0_86 = arith.constant 0 : index
    %c0_87 = arith.constant 0 : index
    %112 = vector.load %arg14[%c0_85, %c0_86, %c0_87] : memref<1x16x64xf32, #tpu.memory_space<vmem>>, vector<1x16x64xf32>
    %113 = vector.shape_cast %112 : vector<1x16x64xf32> to vector<16x64xf32>
    %114 = vector.shape_cast %111 : vector<16x64xf32> to vector<1x16x64xf32>
    tpu.vector_store %arg14[%c0_85, %c0_86, %c0_87], %114 {strides = array<i32>} : memref<1x16x64xf32, #tpu.memory_space<vmem>>, vector<1x16x64xf32>,
    %115 = math.absf %106 : vector<16x64xf32>
    %cst_88 = arith.constant 0.000000e+00 : f32
    %116 = vector.broadcast %cst_88 : f32 to vector<16x64xf32>
    %117 = arith.subf %116, %115 : vector<16x64xf32>
    %118 = math.exp %117 : vector<16x64xf32>
    %119 = math.log1p %118 : vector<16x64xf32>
    %cst_89 = arith.constant 0.000000e+00 : f32
    %120 = vector.broadcast %cst_89 : f32 to vector<16x64xf32>
    %121 = arith.subf %120, %106 : vector<16x64xf32>
    %cst_90 = arith.constant 0.000000e+00 : f32
    %122 = vector.broadcast %cst_90 : f32 to vector<16x64xf32>
    %123 = arith.maximumf %121, %122 : vector<16x64xf32>
    %124 = arith.addf %123, %119 : vector<16x64xf32>
    %cst_91 = arith.constant 1.000000e+02 : f32
    %125 = vector.broadcast %cst_91 : f32 to vector<16x64xf32>
    %126 = arith.minimumf %124, %125 : vector<16x64xf32>
    %cst_92 = arith.constant 0.000000e+00 : f32
    %127 = vector.broadcast %cst_92 : f32 to vector<16x64xf32>
    %128 = arith.maximumf %106, %127 : vector<16x64xf32>
    %129 = arith.addf %128, %119 : vector<16x64xf32>
    %cst_93 = arith.constant 1.000000e+02 : f32
    %130 = vector.broadcast %cst_93 : f32 to vector<16x64xf32>
    %131 = arith.minimumf %129, %130 : vector<16x64xf32>
    %132 = arith.mulf %25, %126 : vector<16x64xf32>
    %cst_94 = arith.constant 1.000000e+00 : f32
    %133 = vector.broadcast %cst_94 : f32 to vector<16x64xf32>
    %134 = arith.subf %133, %25 : vector<16x64xf32>
    %135 = arith.mulf %134, %131 : vector<16x64xf32>
    %136 = arith.addf %132, %135 : vector<16x64xf32>
    %137 = vector.shape_cast %136 : vector<16x64xf32> to vector<1x16x64xf32>
    %cst_95 = arith.constant dense<0.000000e+00> : vector<1xf32>
    %138 = vector.multi_reduction <add>, %137, %cst_95 [1, 2] : vector<1x16x64xf32> to vector<1xf32>
    %139 = vector.shape_cast %138 : vector<1xf32> to vector<1x1x1xf32>
    %140 = vector.extract %139[0, 0, 0] : f32 from vector<1x1x1xf32>
    %cst_96 = arith.constant 1.000000e+00 : f32
    %141 = vector.broadcast %cst_96 : f32 to vector<1x128xf32>
    %142 = vector.broadcast %140 : f32 to vector<1x128xf32>
    %143 = arith.mulf %142, %141 : vector<1x128xf32>
    %c0_97 = arith.constant 0 : index
    %c0_98 = arith.constant 0 : index
    %c0_99 = arith.constant 0 : index
    %144 = vector.load %arg16[%c0_97, %c0_98, %c0_99] : memref<1x1x128xf32, #tpu.memory_space<vmem>>, vector<1x1x128xf32>
    %145 = vector.shape_cast %144 : vector<1x1x128xf32> to vector<1x128xf32>
    %146 = vector.shape_cast %143 : vector<1x128xf32> to vector<1x1x128xf32>
    tpu.vector_store %arg16[%c0_97, %c0_98, %c0_99], %146 {strides = array<i32>} : memref<1x1x128xf32, #tpu.memory_space<vmem>>, vector<1x1x128xf32>,
    return
  }
  func.func @transform_0(%arg0: i32) -> (i32, i32, i32) {
    %c0_i32 = arith.constant 0 : i32
    %c0_i32_0 = arith.constant 0 : i32
    %c0_i32_1 = arith.constant 0 : i32
    return %arg0, %c0_i32, %c0_i32_0 : i32, i32, i32
  }
  func.func @transform_1(%arg0: i32) -> (i32, i32, i32) {
    %c0_i32 = arith.constant 0 : i32
    %c0_i32_0 = arith.constant 0 : i32
    %c0_i32_1 = arith.constant 0 : i32
    %c0_i32_2 = arith.constant 0 : i32
    return %c0_i32, %c0_i32_0, %c0_i32_1 : i32, i32, i32
  }
  func.func @transform_2(%arg0: i32) -> (i32, i32) {
    %c0_i32 = arith.constant 0 : i32
    %c0_i32_0 = arith.constant 0 : i32
    %c0_i32_1 = arith.constant 0 : i32
    return %c0_i32, %c0_i32_0 : i32, i32
  }
  func.func @transform_3(%arg0: i32) -> (i32, i32, i32) {
    %c0_i32 = arith.constant 0 : i32
    %c0_i32_0 = arith.constant 0 : i32
    %c0_i32_1 = arith.constant 0 : i32
    %c0_i32_2 = arith.constant 0 : i32
    return %c0_i32, %c0_i32_0, %c0_i32_1 : i32, i32, i32
  }
  func.func @transform_4(%arg0: i32) -> (i32, i32) {
    %c0_i32 = arith.constant 0 : i32
    %c0_i32_0 = arith.constant 0 : i32
    %c0_i32_1 = arith.constant 0 : i32
    return %c0_i32, %c0_i32_0 : i32, i32
  }
  func.func @transform_5(%arg0: i32) -> (i32, i32, i32) {
    %c0_i32 = arith.constant 0 : i32
    %c0_i32_0 = arith.constant 0 : i32
    %c0_i32_1 = arith.constant 0 : i32
    %c0_i32_2 = arith.constant 0 : i32
    return %c0_i32, %c0_i32_0, %c0_i32_1 : i32, i32, i32
  }
  func.func @transform_6(%arg0: i32) -> (i32, i32) {
    %c0_i32 = arith.constant 0 : i32
    %c0_i32_0 = arith.constant 0 : i32
    %c0_i32_1 = arith.constant 0 : i32
    return %c0_i32, %c0_i32_0 : i32, i32
  }
  func.func @transform_7(%arg0: i32) -> (i32, i32, i32) {
    %c0_i32 = arith.constant 0 : i32
    %c0_i32_0 = arith.constant 0 : i32
    %c0_i32_1 = arith.constant 0 : i32
    %c0_i32_2 = arith.constant 0 : i32
    return %c0_i32, %c0_i32_0, %c0_i32_1 : i32, i32, i32
  }
  func.func @transform_8(%arg0: i32) -> (i32, i32) {
    %c0_i32 = arith.constant 0 : i32
    %c0_i32_0 = arith.constant 0 : i32
    %c0_i32_1 = arith.constant 0 : i32
    return %c0_i32, %c0_i32_0 : i32, i32
  }
  func.func @transform_9(%arg0: i32) -> (i32, i32) {
    %c0_i32 = arith.constant 0 : i32
    %c0_i32_0 = arith.constant 0 : i32
    %c0_i32_1 = arith.constant 0 : i32
    return %c0_i32, %c0_i32_0 : i32, i32
  }
  func.func @transform_10(%arg0: i32) -> (i32, i32) {
    %c0_i32 = arith.constant 0 : i32
    %c0_i32_0 = arith.constant 0 : i32
    %c0_i32_1 = arith.constant 0 : i32
    return %c0_i32, %c0_i32_0 : i32, i32
  }
  func.func @transform_11(%arg0: i32) -> (i32, i32) {
    %c0_i32 = arith.constant 0 : i32
    %c0_i32_0 = arith.constant 0 : i32
    %c0_i32_1 = arith.constant 0 : i32
    return %c0_i32, %c0_i32_0 : i32, i32
  }
  func.func @transform_12(%arg0: i32) -> (i32, i32) {
    %c0_i32 = arith.constant 0 : i32
    %c0_i32_0 = arith.constant 0 : i32
    %c0_i32_1 = arith.constant 0 : i32
    return %c0_i32, %c0_i32_0 : i32, i32
  }
  func.func @transform_13(%arg0: i32) -> (i32, i32, i32) {
    %c0_i32 = arith.constant 0 : i32
    %c0_i32_0 = arith.constant 0 : i32
    %c0_i32_1 = arith.constant 0 : i32
    return %arg0, %c0_i32, %c0_i32_0 : i32, i32, i32
  }
  func.func @transform_14(%arg0: i32) -> (i32, i32, i32) {
    %c0_i32 = arith.constant 0 : i32
    %c0_i32_0 = arith.constant 0 : i32
    %c0_i32_1 = arith.constant 0 : i32
    return %arg0, %c0_i32, %c0_i32_0 : i32, i32, i32
  }
  func.func @transform_15(%arg0: i32) -> (i32, i32, i32) {
    %c0_i32 = arith.constant 0 : i32
    %c0_i32_0 = arith.constant 0 : i32
    %c0_i32_1 = arith.constant 0 : i32
    return %arg0, %c0_i32, %c0_i32_0 : i32, i32, i32
  }
}

</mosaic_0001>

<llo_original>
// kernel: tile.23
$region0: #{tile.23}
  #allocation0 [shape = 's32[1]{0}', space=sflag, size = 0x4, scoped, tag = 'scoped memory for tile.23']
  %s0 = inlined_call_operand.vmem [shape: f32[8], index: 0, kind: input, shape index: {}]
  %s1 = inlined_call_operand.vmem [shape: f32[16,8], index: 1, kind: output, shape index: {}]
  // Predicated region
  $region2: #{tile.23} parent=0 // pred_check
    _
  $region3: #{tile.23} parent=0 // pred_check_branch
    %3 = sbr.rel (0) target = $region5
  $region4: #{tile.23} parent=0 // pred_region
    _
  $region5: #{tile.23} parent=0 // pred_fallthru
    _
  %v4 = vld [vmem:[%s0] ss:$0 sm:$0xff]
  %5 = vst [vmem:[%s1] sm:$0xff] %v4
  %s6 = scalar_lea.vmem %s1, 8
  %7 = vst [vmem:[%s6] sm:$0xff] %v4

// kernel: tile.24
$region0: #{tile.24}
  %s0 = inlined_call_operand.vmem [shape: f32[16,8], index: 0, kind: input, shape index: {}]
  %s1 = inlined_call_operand.vmem [shape: f32[1,128], index: 1, kind: output, shape index: {}]
  $region1: #{tile.24} parent=0
    #allocation0 [shape = 'u8[4096]{0}', space=vmem, size = 0x1000, scoped, tag = 'scoped mem for output reshape']
    %v2 = vld [vmem:[%s0] sm:$0x1]
    %vm3 = vcmask 64512
    %4 = vst.msk [vmem:[#allocation0] sm:$0x1] %vm3, %v2
    %s5 = scalar_lea.vmem %s0, 15
    %v6 = vld [vmem:[%s5] sm:$0x1]
    %7 = vrot.lane.b32.xlu0 %v6, 120
    %v8 = vpop.permute.xlu0 %7
    %vm9 = vcmask 1048512
    %10 = vst.msk [vmem:[#allocation0] sm:$0x1] %vm9, %v8
    %s11 = scalar_lea.vmem %s0, 14
    %v12 = vld [vmem:[%s11] sm:$0x1]
    %13 = vrot.lane.b32.xlu0 %v12, 112
    %v14 = vpop.permute.xlu0 %13
    %vm15 = vcmask 982912
    %16 = vst.msk [vmem:[#allocation0] sm:$0x1] %vm15, %v14
    %s17 = scalar_lea.vmem %s0, 13
    %v18 = vld [vmem:[%s17] sm:$0x1]
    %19 = vrot.lane.b32.xlu0 %v18, 104
    %v20 = vpop.permute.xlu0 %19
    %vm21 = vcmask 917312
    %22 = vst.msk [vmem:[#allocation0] sm:$0x1] %vm21, %v20
    %s23 = scalar_lea.vmem %s0, 12
    %v24 = vld [vmem:[%s23] sm:$0x1]
    %25 = vrot.lane.b32.xlu0 %v24, 96
    %v26 = vpop.permute.xlu0 %25
    %vm27 = vcmask 851712
    %28 = vst.msk [vmem:[#allocation0] sm:$0x1] %vm27, %v26
    %s29 = scalar_lea.vmem %s0, 11
    %v30 = vld [vmem:[%s29] sm:$0x1]
    %31 = vrot.lane.b32.xlu0 %v30, 88
    %v32 = vpop.permute.xlu0 %31
    %vm33 = vcmask 786112
    %34 = vst.msk [vmem:[#allocation0] sm:$0x1] %vm33, %v32
    %s35 = scalar_lea.vmem %s0, 10
    %v36 = vld [vmem:[%s35] sm:$0x1]
    %37 = vrot.lane.b32.xlu0 %v36, 80
    %v38 = vpop.permute.xlu0 %37
    %vm39 = vcmask 720512
    %40 = vst.msk [vmem:[#allocation0] sm:$0x1] %vm39, %v38
    %s41 = scalar_lea.vmem %s0, 9
    %v42 = vld [vmem:[%s41] sm:$0x1]
    %43 = vrot.lane.b32.xlu0 %v42, 72
    %v44 = vpop.permute.xlu0 %43
    %vm45 = vcmask 654912
    %46 = vst.msk [vmem:[#allocation0] sm:$0x1] %vm45, %v44
    %s47 = scalar_lea.vmem %s0, 8
    %v48 = vld [vmem:[%s47] sm:$0x1]
    %49 = vrot.lane.b32.xlu0 %v48, 64
    %v50 = vpop.permute.xlu0 %49
    %vm51 = vcmask 589312
    %52 = vst.msk [vmem:[#allocation0] sm:$0x1] %vm51, %v50
    %s53 = scalar_lea.vmem %s0, 7
    %v54 = vld [vmem:[%s53] sm:$0x1]
    %55 = vrot.lane.b32.xlu0 %v54, 56
    %v56 = vpop.permute.xlu0 %55
    %vm57 = vcmask 523712
    %58 = vst.msk [vmem:[#allocation0] sm:$0x1] %vm57, %v56
    %s59 = scalar_lea.vmem %s0, 6
    %v60 = vld [vmem:[%s59] sm:$0x1]
    %61 = vrot.lane.b32.xlu0 %v60, 48
    %v62 = vpop.permute.xlu0 %61
    %vm63 = vcmask 458112
    %64 = vst.msk [vmem:[#allocation0] sm:$0x1] %vm63, %v62
    %s65 = scalar_lea.vmem %s0, 5
    %v66 = vld [vmem:[%s65] sm:$0x1]
    %67 = vrot.lane.b32.xlu0 %v66, 40
    %v68 = vpop.permute.xlu0 %67
    %vm69 = vcmask 392512
    %70 = vst.msk [vmem:[#allocation0] sm:$0x1] %vm69, %v68
    %s71 = scalar_lea.vmem %s0, 4
    %v72 = vld [vmem:[%s71] sm:$0x1]
    %73 = vrot.lane.b32.xlu0 %v72, 32
    %v74 = vpop.permute.xlu0 %73
    %vm75 = vcmask 326912
    %76 = vst.msk [vmem:[#allocation0] sm:$0x1] %vm75, %v74
    %s77 = scalar_lea.vmem %s0, 3
    %v78 = vld [vmem:[%s77] sm:$0x1]
    %79 = vrot.lane.b32.xlu0 %v78, 24
    %v80 = vpop.permute.xlu0 %79
    %vm81 = vcmask 261312
    %82 = vst.msk [vmem:[#allocation0] sm:$0x1] %vm81, %v80
    %s83 = scalar_lea.vmem %s0, 2
    %v84 = vld [vmem:[%s83] sm:$0x1]
    %85 = vrot.lane.b32.xlu0 %v84, 16
    %v86 = vpop.permute.xlu0 %85
    %vm87 = vcmask 195712
    %88 = vst.msk [vmem:[#allocation0] sm:$0x1] %vm87, %v86
    %s89 = scalar_lea.vmem %s0, 1
    %v90 = vld [vmem:[%s89] sm:$0x1]
    %91 = vrot.lane.b32.xlu0 %v90, 8
    %v92 = vpop.permute.xlu0 %91
    %vm93 = vcmask 130112
    %94 = vst.msk [vmem:[#allocation0] sm:$0x1] %vm93, %v92
    %s96 = ssub.s32 2, 1
    %v97 = vld [vmem:[#allocation0] sm:%s96]
    %s99 = ssub.s32 2, 1
    %100 = vst [vmem:[%s1] sm:%s99] %v97

// kernel: tile.38
$region0: #{tile.38}
  #allocation0 [shape = 's32[1]{0}', space=sflag, size = 0x4, scoped, tag = 'scoped memory for tile.38']
  %s0 = inlined_call_operand.vmem [shape: f32[4], index: 0, kind: input, shape index: {}]
  %s1 = inlined_call_operand.vmem [shape: f32[16,4], index: 1, kind: output, shape index: {}]
  // Predicated region
  $region2: #{tile.38} parent=0 // pred_check
    _
  $region3: #{tile.38} parent=0 // pred_check_branch
    %3 = sbr.rel (0) target = $region5
  $region4: #{tile.38} parent=0 // pred_region
    _
  $region5: #{tile.38} parent=0 // pred_fallthru
    _
  %v4 = vld [vmem:[%s0] ss:$0 sm:$0xff]
  %5 = vst [vmem:[%s1] sm:$0xff] %v4
  %s6 = scalar_lea.vmem %s1, 8
  %7 = vst [vmem:[%s6] sm:$0xff] %v4

// kernel: tile.39
$region0: #{tile.39}
  %s0 = inlined_call_operand.vmem [shape: f32[16,4], index: 0, kind: input, shape index: {}]
  %s1 = inlined_call_operand.vmem [shape: f32[1,64], index: 1, kind: output, shape index: {}]
  $region1: #{tile.39} parent=0
    #allocation0 [shape = 'u8[4096]{0}', space=vmem, size = 0x1000, scoped, tag = 'scoped mem for output reshape']
    %v2 = vld [vmem:[%s0] sm:$0x1]
    %vm3 = vcmask 31744
    %4 = vst.msk [vmem:[#allocation0] sm:$0x1] %vm3, %v2
    %s5 = scalar_lea.vmem %s0, 15
    %v6 = vld [vmem:[%s5] sm:$0x1]
    %7 = vrot.lane.b32.xlu0 %v6, 60
    %v8 = vpop.permute.xlu0 %7
    %vm9 = vcmask 523744
    %10 = vst.msk [vmem:[#allocation0] sm:$0x1] %vm9, %v8
    %s11 = scalar_lea.vmem %s0, 14
    %v12 = vld [vmem:[%s11] sm:$0x1]
    %13 = vrot.lane.b32.xlu0 %v12, 56
    %v14 = vpop.permute.xlu0 %13
    %vm15 = vcmask 490944
    %16 = vst.msk [vmem:[#allocation0] sm:$0x1] %vm15, %v14
    %s17 = scalar_lea.vmem %s0, 13
    %v18 = vld [vmem:[%s17] sm:$0x1]
    %19 = vrot.lane.b32.xlu0 %v18, 52
    %v20 = vpop.permute.xlu0 %19
    %vm21 = vcmask 458144
    %22 = vst.msk [vmem:[#allocation0] sm:$0x1] %vm21, %v20
    %s23 = scalar_lea.vmem %s0, 12
    %v24 = vld [vmem:[%s23] sm:$0x1]
    %25 = vrot.lane.b32.xlu0 %v24, 48
    %v26 = vpop.permute.xlu0 %25
    %vm27 = vcmask 425344
    %28 = vst.msk [vmem:[#allocation0] sm:$0x1] %vm27, %v26
    %s29 = scalar_lea.vmem %s0, 11
    %v30 = vld [vmem:[%s29] sm:$0x1]
    %31 = vrot.lane.b32.xlu0 %v30, 44
    %v32 = vpop.permute.xlu0 %31
    %vm33 = vcmask 392544
    %34 = vst.msk [vmem:[#allocation0] sm:$0x1] %vm33, %v32
    %s35 = scalar_lea.vmem %s0, 10
    %v36 = vld [vmem:[%s35] sm:$0x1]
    %37 = vrot.lane.b32.xlu0 %v36, 40
    %v38 = vpop.permute.xlu0 %37
    %vm39 = vcmask 359744
    %40 = vst.msk [vmem:[#allocation0] sm:$0x1] %vm39, %v38
    %s41 = scalar_lea.vmem %s0, 9
    %v42 = vld [vmem:[%s41] sm:$0x1]
    %43 = vrot.lane.b32.xlu0 %v42, 36
    %v44 = vpop.permute.xlu0 %43
    %vm45 = vcmask 326944
    %46 = vst.msk [vmem:[#allocation0] sm:$0x1] %vm45, %v44
    %s47 = scalar_lea.vmem %s0, 8
    %v48 = vld [vmem:[%s47] sm:$0x1]
    %49 = vrot.lane.b32.xlu0 %v48, 32
    %v50 = vpop.permute.xlu0 %49
    %vm51 = vcmask 294144
    %52 = vst.msk [vmem:[#allocation0] sm:$0x1] %vm51, %v50
    %s53 = scalar_lea.vmem %s0, 7
    %v54 = vld [vmem:[%s53] sm:$0x1]
    %55 = vrot.lane.b32.xlu0 %v54, 28
    %v56 = vpop.permute.xlu0 %55
    %vm57 = vcmask 261344
    %58 = vst.msk [vmem:[#allocation0] sm:$0x1] %vm57, %v56
    %s59 = scalar_lea.vmem %s0, 6
    %v60 = vld [vmem:[%s59] sm:$0x1]
    %61 = vrot.lane.b32.xlu0 %v60, 24
    %v62 = vpop.permute.xlu0 %61
    %vm63 = vcmask 228544
    %64 = vst.msk [vmem:[#allocation0] sm:$0x1] %vm63, %v62
    %s65 = scalar_lea.vmem %s0, 5
    %v66 = vld [vmem:[%s65] sm:$0x1]
    %67 = vrot.lane.b32.xlu0 %v66, 20
    %v68 = vpop.permute.xlu0 %67
    %vm69 = vcmask 195744
    %70 = vst.msk [vmem:[#allocation0] sm:$0x1] %vm69, %v68
    %s71 = scalar_lea.vmem %s0, 4
    %v72 = vld [vmem:[%s71] sm:$0x1]
    %73 = vrot.lane.b32.xlu0 %v72, 16
    %v74 = vpop.permute.xlu0 %73
    %vm75 = vcmask 162944
    %76 = vst.msk [vmem:[#allocation0] sm:$0x1] %vm75, %v74
    %s77 = scalar_lea.vmem %s0, 3
    %v78 = vld [vmem:[%s77] sm:$0x1]
    %79 = vrot.lane.b32.xlu0 %v78, 12
    %v80 = vpop.permute.xlu0 %79
    %vm81 = vcmask 130144
    %82 = vst.msk [vmem:[#allocation0] sm:$0x1] %vm81, %v80
    %s83 = scalar_lea.vmem %s0, 2
    %v84 = vld [vmem:[%s83] sm:$0x1]
    %85 = vrot.lane.b32.xlu0 %v84, 8
    %v86 = vpop.permute.xlu0 %85
    %vm87 = vcmask 97344
    %88 = vst.msk [vmem:[#allocation0] sm:$0x1] %vm87, %v86
    %s89 = scalar_lea.vmem %s0, 1
    %v90 = vld [vmem:[%s89] sm:$0x1]
    %91 = vrot.lane.b32.xlu0 %v90, 4
    %v92 = vpop.permute.xlu0 %91
    %vm93 = vcmask 64544
    %94 = vst.msk [vmem:[#allocation0] sm:$0x1] %vm93, %v92
    %s96 = ssub.s32 2, 1
    %v97 = vld [vmem:[#allocation0] sm:%s96]
    %s99 = ssub.s32 2, 1
    %100 = vst [vmem:[%s1] sm:%s99] %v97

// kernel: tile.28
$region0: #{tile.28}
  #allocation0 [shape = 's32[1]{0}', space=sflag, size = 0x4, scoped, tag = 'scoped memory for tile.28']
  %s0 = inlined_call_operand.vmem [shape: f32[4], index: 0, kind: input, shape index: {}]
  %s1 = inlined_call_operand.vmem [shape: f32[8,4], index: 1, kind: output, shape index: {}]
  // Predicated region
  $region2: #{tile.28} parent=0 // pred_check
    _
  $region3: #{tile.28} parent=0 // pred_check_branch
    %3 = sbr.rel (0) target = $region5
  $region4: #{tile.28} parent=0 // pred_region
    _
  $region5: #{tile.28} parent=0 // pred_fallthru
    _
  %v4 = vld [vmem:[%s0] ss:$0 sm:$0xff]
  %5 = vst [vmem:[%s1] sm:$0xff] %v4

// kernel: tile.29
$region0: #{tile.29}
  %s0 = inlined_call_operand.vmem [shape: f32[8,4], index: 0, kind: input, shape index: {}]
  %s1 = inlined_call_operand.vmem [shape: f32[1,32], index: 1, kind: output, shape index: {}]
  $region1: #{tile.29} parent=0
    #allocation0 [shape = 'u8[4096]{0}', space=vmem, size = 0x1000, scoped, tag = 'scoped mem for output reshape']
    %v2 = vld [vmem:[%s0] sm:$0x1]
    %vm3 = vcmask 31744
    %4 = vst.msk [vmem:[#allocation0] sm:$0x1] %vm3, %v2
    %s5 = scalar_lea.vmem %s0, 7
    %v6 = vld [vmem:[%s5] sm:$0x1]
    %7 = vrot.lane.b32.xlu0 %v6, 28
    %v8 = vpop.permute.xlu0 %7
    %vm9 = vcmask 261344
    %10 = vst.msk [vmem:[#allocation0] sm:$0x1] %vm9, %v8
    %s11 = scalar_lea.vmem %s0, 6
    %v12 = vld [vmem:[%s11] sm:$0x1]
    %13 = vrot.lane.b32.xlu0 %v12, 24
    %v14 = vpop.permute.xlu0 %13
    %vm15 = vcmask 228544
    %16 = vst.msk [vmem:[#allocation0] sm:$0x1] %vm15, %v14
    %s17 = scalar_lea.vmem %s0, 5
    %v18 = vld [vmem:[%s17] sm:$0x1]
    %19 = vrot.lane.b32.xlu0 %v18, 20
    %v20 = vpop.permute.xlu0 %19
    %vm21 = vcmask 195744
    %22 = vst.msk [vmem:[#allocation0] sm:$0x1] %vm21, %v20
    %s23 = scalar_lea.vmem %s0, 4
    %v24 = vld [vmem:[%s23] sm:$0x1]
    %25 = vrot.lane.b32.xlu0 %v24, 16
    %v26 = vpop.permute.xlu0 %25
    %vm27 = vcmask 162944
    %28 = vst.msk [vmem:[#allocation0] sm:$0x1] %vm27, %v26
    %s29 = scalar_lea.vmem %s0, 3
    %v30 = vld [vmem:[%s29] sm:$0x1]
    %31 = vrot.lane.b32.xlu0 %v30, 12
    %v32 = vpop.permute.xlu0 %31
    %vm33 = vcmask 130144
    %34 = vst.msk [vmem:[#allocation0] sm:$0x1] %vm33, %v32
    %s35 = scalar_lea.vmem %s0, 2
    %v36 = vld [vmem:[%s35] sm:$0x1]
    %37 = vrot.lane.b32.xlu0 %v36, 8
    %v38 = vpop.permute.xlu0 %37
    %vm39 = vcmask 97344
    %40 = vst.msk [vmem:[#allocation0] sm:$0x1] %vm39, %v38
    %s41 = scalar_lea.vmem %s0, 1
    %v42 = vld [vmem:[%s41] sm:$0x1]
    %43 = vrot.lane.b32.xlu0 %v42, 4
    %v44 = vpop.permute.xlu0 %43
    %vm45 = vcmask 64544
    %46 = vst.msk [vmem:[#allocation0] sm:$0x1] %vm45, %v44
    %s48 = ssub.s32 2, 1
    %v49 = vld [vmem:[#allocation0] sm:%s48]
    %s51 = ssub.s32 2, 1
    %52 = vst [vmem:[%s1] sm:%s51] %v49

// kernel: composite_model_forward.1
$region0: #{composite_model_forward.1}
  #allocation0 [shape = 'u32[]', space=smem, size = 0x4, offset = 0x4, fixed_abs, tag = 'smem constant byte address 0x4 - core index']
  #allocation1 [shape = 'u32[72,128]{1,0:T(1,128)}', space=vmem, size = 0x9000, scoped, tag = 'internal scratch']
  %s0 = inlined_call_operand.vmem [shape: f32[2,16,64], index: 0, kind: input, shape index: {}]
  %s1 = inlined_call_operand.vmem [shape: f32[3,64,128], index: 1, kind: input, shape index: {}]
  %s2 = inlined_call_operand.vmem [shape: f32[1,128], index: 2, kind: input, shape index: {}]
  %s3 = inlined_call_operand.vmem [shape: f32[3,64,32], index: 3, kind: input, shape index: {}]
  %s4 = inlined_call_operand.vmem [shape: f32[1,32], index: 4, kind: input, shape index: {}]
  %s5 = inlined_call_operand.vmem [shape: f32[3,64,128], index: 5, kind: input, shape index: {}]
  %s6 = inlined_call_operand.vmem [shape: f32[1,128], index: 6, kind: input, shape index: {}]
  %s7 = inlined_call_operand.vmem [shape: f32[3,128,64], index: 7, kind: input, shape index: {}]
  %s8 = inlined_call_operand.vmem [shape: f32[1,64], index: 8, kind: input, shape index: {}]
  %s9 = inlined_call_operand.vmem [shape: f32[128,64], index: 9, kind: input, shape index: {}]
  %s10 = inlined_call_operand.vmem [shape: f32[8,16], index: 10, kind: input, shape index: {}]
  %s11 = inlined_call_operand.vmem [shape: f32[32,64], index: 11, kind: input, shape index: {}]
  %s12 = inlined_call_operand.vmem [shape: f32[16,8], index: 12, kind: input, shape index: {}]
  %s13 = inlined_call_operand.vmem [shape: f32[2,16,64], index: 13, kind: output, shape index: {0}]
  %s14 = inlined_call_operand.vmem [shape: f32[2,8,32], index: 14, kind: output, shape index: {1}]
  %s15 = inlined_call_operand.vmem [shape: f32[2,1,128], index: 15, kind: output, shape index: {2}]
  %16 = xla_tuple %s13, %s14, %s15
  %s17 = sld [smem:[#allocation0]]
  $region101: #{composite_model_forward.1} parent=0
    _
  %s19 = ssub.s32 1, %s17
  %s20 = scalar_select 0, %s19, %s17
  loop: start=0, step=1, limit=4
  $region2: #{composite_model_forward.1} parent=0 // loop_pre_header
    _
  $region3: #{composite_model_forward.1} parent=0 // loop_header
    %s22 = sphi 0, %s26
    %p23 = scmp.ge.s32.totalorder %s22, 4
    %s32 = sphi 0, %s34
    %s35 = sphi 0, %s32
    %s36 = sphi 0, %s35
    %s52 = sphi 0, %s36
    %s56 = sphi 0, %s56
    %s58 = sphi 0, %s56
    %s59 = sphi 0, %s58
    %s73 = sphi 0, %s59
    %s77 = sphi 0, %s77
    %s79 = sphi 0, %s77
    %s80 = sphi 0, %s79
    %s94 = sphi 0, %s80
    %s98 = sphi 0, %s98
    %s100 = sphi 0, %s98
    %s101 = sphi 0, %s100
    %s115 = sphi 0, %s101
    %s119 = sphi 0, %s119
    %s121 = sphi 0, %s119
    %s122 = sphi 0, %s121
    %s136 = sphi 0, %s122
    %s140 = sphi 0, %s140
    %s142 = sphi 0, %s140
    %s143 = sphi 0, %s142
    %s157 = sphi 0, %s143
    %s161 = sphi 0, %s161
    %s163 = sphi 0, %s161
    %s164 = sphi 0, %s163
    %s178 = sphi 0, %s164
    %s182 = sphi 0, %s182
    %s184 = sphi 0, %s182
    %s185 = sphi 0, %s184
    %s199 = sphi 0, %s185
    %s203 = sphi 0, %s203
    %s205 = sphi 0, %s203
    %s206 = sphi 0, %s205
    %s220 = sphi 0, %s206
    %s224 = sphi 0, %s224
    %s226 = sphi 0, %s224
    %s227 = sphi 0, %s226
    %s241 = sphi 0, %s227
    %s245 = sphi 0, %s245
    %s247 = sphi 0, %s245
    %s248 = sphi 0, %s247
    %s262 = sphi 0, %s248
    %s266 = sphi 0, %s266
    %s268 = sphi 0, %s266
    %s269 = sphi 0, %s268
    %s283 = sphi 0, %s269
    %s287 = sphi 0, %s287
    %s289 = sphi 0, %s287
    %s290 = sphi 0, %s289
    %s304 = sphi 0, %s290
    %s310 = sphi 0, %s312
    %s313 = sphi 0, %s310
    %s314 = sphi 0, %s313
    %s330 = sphi 0, %s314
    %s336 = sphi 0, %s338
    %s339 = sphi 0, %s336
    %s340 = sphi 0, %s339
    %s356 = sphi 0, %s340
    %s362 = sphi 0, %s364
    %s365 = sphi 0, %s362
    %s366 = sphi 0, %s365
    %s382 = sphi 0, %s366
  $region4: #{composite_model_forward.1} parent=0 // loop_header_branch
    %25 = sbr.rel (%p23) target = $region8
  $region5: #{composite_model_forward.1} parent=0 // loop_body
    %s27 = ssub.s32 %s22, 1
    %s28 = ssub.s32 %s22, 2
    %s29 = sadd.s32 %s22, 1
    %s30 = ssub.s32 %s22, %s29
    %p31 = scmp.eq.s32.totalorder %s30, 0
    %s33 = sadd.s32 %s32, 1
    %s34 = scalar_select %p31, %s32, %s33
    %p37 = pneg %p31
    %p38 = scmp.eq.s32.totalorder %s22, 1
    %p39 = por %p37, %p38
    %p40 = scmp.ne.s32.totalorder %s32, %s35
    %p41 = scmp.eq.s32.totalorder %s22, 0
    %p42 = por %p40, %p41
    %p43 = scmp.ne.s32.totalorder %s32, %s35
    %p44 = scmp.eq.s32.totalorder %s27, 1
    %p45 = por %p43, %p44
    %p46 = scmp.ne.s32.totalorder %s35, %s36
    %p47 = scmp.eq.s32.totalorder %s27, 0
    %p48 = por %p46, %p47
    %p49 = scmp.ne.s32.totalorder %s35, %s36
    %p50 = scmp.eq.s32.totalorder %s28, 1
    %p51 = por %p49, %p50
    %p53 = scmp.ne.s32.totalorder %s36, %s52
    %p54 = scmp.eq.s32.totalorder %s28, 0
    %p55 = por %p53, %p54
    %s57 = sadd.s32 %s56, 1
    %p60 = scmp.eq.s32.totalorder %s22, 1
    %p61 = scmp.ne.s32.totalorder %s56, %s58
    %p62 = scmp.eq.s32.totalorder %s22, 0
    %p63 = por %p61, %p62
    %p64 = scmp.ne.s32.totalorder %s56, %s58
    %p65 = scmp.eq.s32.totalorder %s27, 1
    %p66 = por %p64, %p65
    %p67 = scmp.ne.s32.totalorder %s58, %s59
    %p68 = scmp.eq.s32.totalorder %s27, 0
    %p69 = por %p67, %p68
    %p70 = scmp.ne.s32.totalorder %s58, %s59
    %p71 = scmp.eq.s32.totalorder %s28, 1
    %p72 = por %p70, %p71
    %p74 = scmp.ne.s32.totalorder %s59, %s73
    %p75 = scmp.eq.s32.totalorder %s28, 0
    %p76 = por %p74, %p75
    %s78 = sadd.s32 %s77, 1
    %p81 = scmp.eq.s32.totalorder %s22, 1
    %p82 = scmp.ne.s32.totalorder %s77, %s79
    %p83 = scmp.eq.s32.totalorder %s22, 0
    %p84 = por %p82, %p83
    %p85 = scmp.ne.s32.totalorder %s77, %s79
    %p86 = scmp.eq.s32.totalorder %s27, 1
    %p87 = por %p85, %p86
    %p88 = scmp.ne.s32.totalorder %s79, %s80
    %p89 = scmp.eq.s32.totalorder %s27, 0
    %p90 = por %p88, %p89
    %p91 = scmp.ne.s32.totalorder %s79, %s80
    %p92 = scmp.eq.s32.totalorder %s28, 1
    %p93 = por %p91, %p92
    %p95 = scmp.ne.s32.totalorder %s80, %s94
    %p96 = scmp.eq.s32.totalorder %s28, 0
    %p97 = por %p95, %p96
    %s99 = sadd.s32 %s98, 1
    %p102 = scmp.eq.s32.totalorder %s22, 1
    %p103 = scmp.ne.s32.totalorder %s98, %s100
    %p104 = scmp.eq.s32.totalorder %s22, 0
    %p105 = por %p103, %p104
    %p106 = scmp.ne.s32.totalorder %s98, %s100
    %p107 = scmp.eq.s32.totalorder %s27, 1
    %p108 = por %p106, %p107
    %p109 = scmp.ne.s32.totalorder %s100, %s101
    %p110 = scmp.eq.s32.totalorder %s27, 0
    %p111 = por %p109, %p110
    %p112 = scmp.ne.s32.totalorder %s100, %s101
    %p113 = scmp.eq.s32.totalorder %s28, 1
    %p114 = por %p112, %p113
    %p116 = scmp.ne.s32.totalorder %s101, %s115
    %p117 = scmp.eq.s32.totalorder %s28, 0
    %p118 = por %p116, %p117
    %s120 = sadd.s32 %s119, 1
    %p123 = scmp.eq.s32.totalorder %s22, 1
    %p124 = scmp.ne.s32.totalorder %s119, %s121
    %p125 = scmp.eq.s32.totalorder %s22, 0
    %p126 = por %p124, %p125
    %p127 = scmp.ne.s32.totalorder %s119, %s121
    %p128 = scmp.eq.s32.totalorder %s27, 1
    %p129 = por %p127, %p128
    %p130 = scmp.ne.s32.totalorder %s121, %s122
    %p131 = scmp.eq.s32.totalorder %s27, 0
    %p132 = por %p130, %p131
    %p133 = scmp.ne.s32.totalorder %s121, %s122
    %p134 = scmp.eq.s32.totalorder %s28, 1
    %p135 = por %p133, %p134
    %p137 = scmp.ne.s32.totalorder %s122, %s136
    %p138 = scmp.eq.s32.totalorder %s28, 0
    %p139 = por %p137, %p138
    %s141 = sadd.s32 %s140, 1
    %p144 = scmp.eq.s32.totalorder %s22, 1
    %p145 = scmp.ne.s32.totalorder %s140, %s142
    %p146 = scmp.eq.s32.totalorder %s22, 0
    %p147 = por %p145, %p146
    %p148 = scmp.ne.s32.totalorder %s140, %s142
    %p149 = scmp.eq.s32.totalorder %s27, 1
    %p150 = por %p148, %p149
    %p151 = scmp.ne.s32.totalorder %s142, %s143
    %p152 = scmp.eq.s32.totalorder %s27, 0
    %p153 = por %p151, %p152
    %p154 = scmp.ne.s32.totalorder %s142, %s143
    %p155 = scmp.eq.s32.totalorder %s28, 1
    %p156 = por %p154, %p155
    %p158 = scmp.ne.s32.totalorder %s143, %s157
    %p159 = scmp.eq.s32.totalorder %s28, 0
    %p160 = por %p158, %p159
    %s162 = sadd.s32 %s161, 1
    %p165 = scmp.eq.s32.totalorder %s22, 1
    %p166 = scmp.ne.s32.totalorder %s161, %s163
    %p167 = scmp.eq.s32.totalorder %s22, 0
    %p168 = por %p166, %p167
    %p169 = scmp.ne.s32.totalorder %s161, %s163
    %p170 = scmp.eq.s32.totalorder %s27, 1
    %p171 = por %p169, %p170
    %p172 = scmp.ne.s32.totalorder %s163, %s164
    %p173 = scmp.eq.s32.totalorder %s27, 0
    %p174 = por %p172, %p173
    %p175 = scmp.ne.s32.totalorder %s163, %s164
    %p176 = scmp.eq.s32.totalorder %s28, 1
    %p177 = por %p175, %p176
    %p179 = scmp.ne.s32.totalorder %s164, %s178
    %p180 = scmp.eq.s32.totalorder %s28, 0
    %p181 = por %p179, %p180
    %s183 = sadd.s32 %s182, 1
    %p186 = scmp.eq.s32.totalorder %s22, 1
    %p187 = scmp.ne.s32.totalorder %s182, %s184
    %p188 = scmp.eq.s32.totalorder %s22, 0
    %p189 = por %p187, %p188
    %p190 = scmp.ne.s32.totalorder %s182, %s184
    %p191 = scmp.eq.s32.totalorder %s27, 1
    %p192 = por %p190, %p191
    %p193 = scmp.ne.s32.totalorder %s184, %s185
    %p194 = scmp.eq.s32.totalorder %s27, 0
    %p195 = por %p193, %p194
    %p196 = scmp.ne.s32.totalorder %s184, %s185
    %p197 = scmp.eq.s32.totalorder %s28, 1
    %p198 = por %p196, %p197
    %p200 = scmp.ne.s32.totalorder %s185, %s199
    %p201 = scmp.eq.s32.totalorder %s28, 0
    %p202 = por %p200, %p201
    %s204 = sadd.s32 %s203, 1
    %p207 = scmp.eq.s32.totalorder %s22, 1
    %p208 = scmp.ne.s32.totalorder %s203, %s205
    %p209 = scmp.eq.s32.totalorder %s22, 0
    %p210 = por %p208, %p209
    %p211 = scmp.ne.s32.totalorder %s203, %s205
    %p212 = scmp.eq.s32.totalorder %s27, 1
    %p213 = por %p211, %p212
    %p214 = scmp.ne.s32.totalorder %s205, %s206
    %p215 = scmp.eq.s32.totalorder %s27, 0
    %p216 = por %p214, %p215
    %p217 = scmp.ne.s32.totalorder %s205, %s206
    %p218 = scmp.eq.s32.totalorder %s28, 1
    %p219 = por %p217, %p218
    %p221 = scmp.ne.s32.totalorder %s206, %s220
    %p222 = scmp.eq.s32.totalorder %s28, 0
    %p223 = por %p221, %p222
    %s225 = sadd.s32 %s224, 1
    %p228 = scmp.eq.s32.totalorder %s22, 1
    %p229 = scmp.ne.s32.totalorder %s224, %s226
    %p230 = scmp.eq.s32.totalorder %s22, 0
    %p231 = por %p229, %p230
    %p232 = scmp.ne.s32.totalorder %s224, %s226
    %p233 = scmp.eq.s32.totalorder %s27, 1
    %p234 = por %p232, %p233
    %p235 = scmp.ne.s32.totalorder %s226, %s227
    %p236 = scmp.eq.s32.totalorder %s27, 0
    %p237 = por %p235, %p236
    %p238 = scmp.ne.s32.totalorder %s226, %s227
    %p239 = scmp.eq.s32.totalorder %s28, 1
    %p240 = por %p238, %p239
    %p242 = scmp.ne.s32.totalorder %s227, %s241
    %p243 = scmp.eq.s32.totalorder %s28, 0
    %p244 = por %p242, %p243
    %s246 = sadd.s32 %s245, 1
    %p249 = scmp.eq.s32.totalorder %s22, 1
    %p250 = scmp.ne.s32.totalorder %s245, %s247
    %p251 = scmp.eq.s32.totalorder %s22, 0
    %p252 = por %p250, %p251
    %p253 = scmp.ne.s32.totalorder %s245, %s247
    %p254 = scmp.eq.s32.totalorder %s27, 1
    %p255 = por %p253, %p254
    %p256 = scmp.ne.s32.totalorder %s247, %s248
    %p257 = scmp.eq.s32.totalorder %s27, 0
    %p258 = por %p256, %p257
    %p259 = scmp.ne.s32.totalorder %s247, %s248
    %p260 = scmp.eq.s32.totalorder %s28, 1
    %p261 = por %p259, %p260
    %p263 = scmp.ne.s32.totalorder %s248, %s262
    %p264 = scmp.eq.s32.totalorder %s28, 0
    %p265 = por %p263, %p264
    %s267 = sadd.s32 %s266, 1
    %p270 = scmp.eq.s32.totalorder %s22, 1
    %p271 = scmp.ne.s32.totalorder %s266, %s268
    %p272 = scmp.eq.s32.totalorder %s22, 0
    %p273 = por %p271, %p272
    %p274 = scmp.ne.s32.totalorder %s266, %s268
    %p275 = scmp.eq.s32.totalorder %s27, 1
    %p276 = por %p274, %p275
    %p277 = scmp.ne.s32.totalorder %s268, %s269
    %p278 = scmp.eq.s32.totalorder %s27, 0
    %p279 = por %p277, %p278
    %p280 = scmp.ne.s32.totalorder %s268, %s269
    %p281 = scmp.eq.s32.totalorder %s28, 1
    %p282 = por %p280, %p281
    %p284 = scmp.ne.s32.totalorder %s269, %s283
    %p285 = scmp.eq.s32.totalorder %s28, 0
    %p286 = por %p284, %p285
    %s288 = sadd.s32 %s287, 1
    %p291 = scmp.eq.s32.totalorder %s22, 1
    %p292 = scmp.ne.s32.totalorder %s287, %s289
    %p293 = scmp.eq.s32.totalorder %s22, 0
    %p294 = por %p292, %p293
    %p295 = scmp.ne.s32.totalorder %s287, %s289
    %p296 = scmp.eq.s32.totalorder %s27, 1
    %p297 = por %p295, %p296
    %p298 = scmp.ne.s32.totalorder %s289, %s290
    %p299 = scmp.eq.s32.totalorder %s27, 0
    %p300 = por %p298, %p299
    %p301 = scmp.ne.s32.totalorder %s289, %s290
    %p302 = scmp.eq.s32.totalorder %s28, 1
    %p303 = por %p301, %p302
    %p305 = scmp.ne.s32.totalorder %s290, %s304
    %p306 = scmp.eq.s32.totalorder %s28, 0
    %p307 = por %p305, %p306
    %s308 = ssub.s32 %s22, %s29
    %p309 = scmp.eq.s32.totalorder %s308, 0
    %s311 = sadd.s32 %s310, 1
    %s312 = scalar_select %p309, %s310, %s311
    %p315 = pneg %p309
    %p316 = scmp.eq.s32.totalorder %s22, 1
    %p317 = por %p315, %p316
    %p318 = scmp.ne.s32.totalorder %s310, %s313
    %p319 = scmp.eq.s32.totalorder %s22, 0
    %p320 = por %p318, %p319
    %p321 = scmp.ne.s32.totalorder %s310, %s313
    %p322 = scmp.eq.s32.totalorder %s27, 1
    %p323 = por %p321, %p322
    %p324 = scmp.ne.s32.totalorder %s313, %s314
    %p325 = scmp.eq.s32.totalorder %s27, 0
    %p326 = por %p324, %p325
    %p327 = scmp.ne.s32.totalorder %s313, %s314
    %p328 = scmp.eq.s32.totalorder %s28, 1
    %p329 = por %p327, %p328
    %p331 = scmp.ne.s32.totalorder %s314, %s330
    %p332 = scmp.eq.s32.totalorder %s28, 0
    %p333 = por %p331, %p332
    %s334 = ssub.s32 %s22, %s29
    %p335 = scmp.eq.s32.totalorder %s334, 0
    %s337 = sadd.s32 %s336, 1
    %s338 = scalar_select %p335, %s336, %s337
    %p341 = pneg %p335
    %p342 = scmp.eq.s32.totalorder %s22, 1
    %p343 = por %p341, %p342
    %p344 = scmp.ne.s32.totalorder %s336, %s339
    %p345 = scmp.eq.s32.totalorder %s22, 0
    %p346 = por %p344, %p345
    %p347 = scmp.ne.s32.totalorder %s336, %s339
    %p348 = scmp.eq.s32.totalorder %s27, 1
    %p349 = por %p347, %p348
    %p350 = scmp.ne.s32.totalorder %s339, %s340
    %p351 = scmp.eq.s32.totalorder %s27, 0
    %p352 = por %p350, %p351
    %p353 = scmp.ne.s32.totalorder %s339, %s340
    %p354 = scmp.eq.s32.totalorder %s28, 1
    %p355 = por %p353, %p354
    %p357 = scmp.ne.s32.totalorder %s340, %s356
    %p358 = scmp.eq.s32.totalorder %s28, 0
    %p359 = por %p357, %p358
    %s360 = ssub.s32 %s22, %s29
    %p361 = scmp.eq.s32.totalorder %s360, 0
    %s363 = sadd.s32 %s362, 1
    %s364 = scalar_select %p361, %s362, %s363
    %p367 = pneg %p361
    %p368 = scmp.eq.s32.totalorder %s22, 1
    %p369 = por %p367, %p368
    %p370 = scmp.ne.s32.totalorder %s362, %s365
    %p371 = scmp.eq.s32.totalorder %s22, 0
    %p372 = por %p370, %p371
    %p373 = scmp.ne.s32.totalorder %s362, %s365
    %p374 = scmp.eq.s32.totalorder %s27, 1
    %p375 = por %p373, %p374
    %p376 = scmp.ne.s32.totalorder %s365, %s366
    %p377 = scmp.eq.s32.totalorder %s27, 0
    %p378 = por %p376, %p377
    %p379 = scmp.ne.s32.totalorder %s365, %s366
    %p380 = scmp.eq.s32.totalorder %s28, 1
    %p381 = por %p379, %p380
    %p383 = scmp.ne.s32.totalorder %s366, %s382
    %p384 = scmp.eq.s32.totalorder %s28, 0
    %p385 = por %p383, %p384
    %p386 = scmp.le.s32.totalorder 1, %s22
    %p387 = scmp.lt.s32.totalorder %s22, 3
    %p388 = pnand %p386, %p387
    %p389 = pneg %p388
    // Predicated region
    $region9: #{composite_model_forward.1} parent=5 // pred_check
      _
    $region10: #{composite_model_forward.1} parent=5 // pred_check_branch
      %391 = sbr.rel (%p388) target = $region12
    $region11: #{composite_model_forward.1} parent=5 // pred_region
      %s392 = ssub.s32 %s22, 1
      // Predicated region
      $region13: #{composite_model_forward.1} parent=11 // pred_check
        %p393 = pneg %p69
      $region14: #{composite_model_forward.1} parent=11 // pred_check_branch
        %395 = sbr.rel (%p393) target = $region16
      $region15: #{composite_model_forward.1} parent=11 // pred_region
        _
      $region16: #{composite_model_forward.1} parent=11 // pred_fallthru
        _
      // Predicated region
      $region17: #{composite_model_forward.1} parent=11 // pred_check
        %p396 = pneg %p90
      $region18: #{composite_model_forward.1} parent=11 // pred_check_branch
        %398 = sbr.rel (%p396) target = $region20
      $region19: #{composite_model_forward.1} parent=11 // pred_region
        _
      $region20: #{composite_model_forward.1} parent=11 // pred_fallthru
        _
      // Predicated region
      $region21: #{composite_model_forward.1} parent=11 // pred_check
        %p399 = pneg %p111
      $region22: #{composite_model_forward.1} parent=11 // pred_check_branch
        %401 = sbr.rel (%p399) target = $region24
      $region23: #{composite_model_forward.1} parent=11 // pred_region
        _
      $region24: #{composite_model_forward.1} parent=11 // pred_fallthru
        _
      // Predicated region
      $region25: #{composite_model_forward.1} parent=11 // pred_check
        %p402 = pneg %p132
      $region26: #{composite_model_forward.1} parent=11 // pred_check_branch
        %404 = sbr.rel (%p402) target = $region28
      $region27: #{composite_model_forward.1} parent=11 // pred_region
        _
      $region28: #{composite_model_forward.1} parent=11 // pred_fallthru
        _
      // Predicated region
      $region29: #{composite_model_forward.1} parent=11 // pred_check
        %p405 = pneg %p153
      $region30: #{composite_model_forward.1} parent=11 // pred_check_branch
        %407 = sbr.rel (%p405) target = $region32
      $region31: #{composite_model_forward.1} parent=11 // pred_region
        _
      $region32: #{composite_model_forward.1} parent=11 // pred_fallthru
        _
      // Predicated region
      $region33: #{composite_model_forward.1} parent=11 // pred_check
        %p408 = pneg %p174
      $region34: #{composite_model_forward.1} parent=11 // pred_check_branch
        %410 = sbr.rel (%p408) target = $region36
      $region35: #{composite_model_forward.1} parent=11 // pred_region
        _
      $region36: #{composite_model_forward.1} parent=11 // pred_fallthru
        _
      // Predicated region
      $region37: #{composite_model_forward.1} parent=11 // pred_check
        %p411 = pneg %p195
      $region38: #{composite_model_forward.1} parent=11 // pred_check_branch
        %413 = sbr.rel (%p411) target = $region40
      $region39: #{composite_model_forward.1} parent=11 // pred_region
        _
      $region40: #{composite_model_forward.1} parent=11 // pred_fallthru
        _
      // Predicated region
      $region41: #{composite_model_forward.1} parent=11 // pred_check
        %p414 = pneg %p216
      $region42: #{composite_model_forward.1} parent=11 // pred_check_branch
        %416 = sbr.rel (%p414) target = $region44
      $region43: #{composite_model_forward.1} parent=11 // pred_region
        _
      $region44: #{composite_model_forward.1} parent=11 // pred_fallthru
        _
      // Predicated region
      $region45: #{composite_model_forward.1} parent=11 // pred_check
        %p417 = pneg %p237
      $region46: #{composite_model_forward.1} parent=11 // pred_check_branch
        %419 = sbr.rel (%p417) target = $region48
      $region47: #{composite_model_forward.1} parent=11 // pred_region
        _
      $region48: #{composite_model_forward.1} parent=11 // pred_fallthru
        _
      // Predicated region
      $region49: #{composite_model_forward.1} parent=11 // pred_check
        %p420 = pneg %p258
      $region50: #{composite_model_forward.1} parent=11 // pred_check_branch
        %422 = sbr.rel (%p420) target = $region52
      $region51: #{composite_model_forward.1} parent=11 // pred_region
        _
      $region52: #{composite_model_forward.1} parent=11 // pred_fallthru
        _
      // Predicated region
      $region53: #{composite_model_forward.1} parent=11 // pred_check
        %p423 = pneg %p279
      $region54: #{composite_model_forward.1} parent=11 // pred_check_branch
        %425 = sbr.rel (%p423) target = $region56
      $region55: #{composite_model_forward.1} parent=11 // pred_region
        _
      $region56: #{composite_model_forward.1} parent=11 // pred_fallthru
        _
      // Predicated region
      $region57: #{composite_model_forward.1} parent=11 // pred_check
        %p426 = pneg %p300
      $region58: #{composite_model_forward.1} parent=11 // pred_check_branch
        %428 = sbr.rel (%p426) target = $region60
      $region59: #{composite_model_forward.1} parent=11 // pred_region
        _
      $region60: #{composite_model_forward.1} parent=11 // pred_fallthru
        _
    $region12: #{composite_model_forward.1} parent=5 // pred_fallthru
      _
    %p429 = scmp.lt.s32.totalorder %s22, 2
    // Predicated region
    $region61: #{composite_model_forward.1} parent=5 // pred_check
      %p430 = pneg %p429
    $region62: #{composite_model_forward.1} parent=5 // pred_check_branch
      %432 = sbr.rel (%p430) target = $region64
    $region63: #{composite_model_forward.1} parent=5 // pred_region
      // Predicated region
      $region65: #{composite_model_forward.1} parent=63 // pred_check
        %p433 = pneg %p42
      $region66: #{composite_model_forward.1} parent=63 // pred_check_branch
        %435 = sbr.rel (%p433) target = $region68
      $region67: #{composite_model_forward.1} parent=63 // pred_region
        %p436 = scmp.lt.s32.totalorder %s22, 1
        %s437 = scalar_select %p436, %s22, 1
        %s438 = smul.addr %s437, 2
        %s439 = smul.addr %s438, 8
        %s440 = scalar_lea.vmem %s0, %s439
      $region68: #{composite_model_forward.1} parent=63 // pred_fallthru
        _
    $region64: #{composite_model_forward.1} parent=5 // pred_fallthru
      _
    %p441 = scmp.le.s32.totalorder 1, %s22
    %p442 = scmp.lt.s32.totalorder %s22, 3
    %p443 = pnand %p441, %p442
    %p444 = pneg %p443
    // Predicated region
    $region69: #{composite_model_forward.1} parent=5 // pred_check
      _
    $region70: #{composite_model_forward.1} parent=5 // pred_check_branch
      %446 = sbr.rel (%p443) target = $region72
    $region71: #{composite_model_forward.1} parent=5 // pred_region
      %s447 = ssub.s32 %s22, 1
      %p448 = scmp.lt.s32.totalorder %s27, 1
      %s449 = scalar_select %p448, %s27, 1
      %s450 = smul.addr %s449, 2
      %s451 = smul.addr %s450, 8
      %s452 = scalar_lea.vmem %s0, %s451
      %p453 = pneg %p48
      %p454 = pneg %p45
      %p455 = pneg %p69
      %p456 = pneg %p66
      %p457 = pneg %p90
      %p458 = pneg %p87
      %p459 = pneg %p111
      %p460 = pneg %p108
      %p461 = pneg %p132
      %p462 = pneg %p129
      %p463 = pneg %p153
      %p464 = pneg %p150
      %p465 = pneg %p174
      %p466 = pneg %p171
      %p467 = pneg %p195
      %p468 = pneg %p192
      %p469 = pneg %p216
      %p470 = pneg %p213
      %p471 = pneg %p237
      %p472 = pneg %p234
      %p473 = pneg %p258
      %p474 = pneg %p255
      %p475 = pneg %p279
      %p476 = pneg %p276
      %p477 = pneg %p300
      %p478 = pneg %p297
      %p479 = pneg %p326
      %p480 = pneg %p323
      %p481 = scmp.lt.s32.totalorder %s27, 1
      %s482 = scalar_select %p481, %s27, 1
      %s483 = smul.addr %s482, 2
      %s484 = smul.addr %s483, 8
      %s485 = scalar_lea.vmem %s13, %s484
      %p486 = pneg %p352
      %p487 = pneg %p349
      %p488 = scmp.lt.s32.totalorder %s27, 1
      %s489 = scalar_select %p488, %s27, 1
      %s490 = smul.addr %s489, 8
      %s491 = scalar_lea.vmem %s14, %s490
      %p492 = pneg %p378
      %p493 = pneg %p375
      %p494 = scmp.lt.s32.totalorder %s27, 1
      %s495 = scalar_select %p494, %s27, 1
      %s496 = scalar_lea.vmem %s15, %s495
      %p497 = scmp.lt.s32.totalorder %s27, 1
      %s498 = scalar_select %p497, %s27, 1
      %s499 = smul.addr %s498, 2
      %s500 = smul.addr %s499, 8
      %s501 = scalar_lea.vmem %s0, %s500
      %p502 = scmp.lt.s32.totalorder %s27, 1
      %s503 = scalar_select %p502, %s27, 1
      %s504 = smul.addr %s503, 2
      %s505 = smul.addr %s504, 8
      %s506 = scalar_lea.vmem %s13, %s505
      %p507 = scmp.lt.s32.totalorder %s27, 1
      %s508 = scalar_select %p507, %s27, 1
      %s509 = smul.addr %s508, 8
      %s510 = scalar_lea.vmem %s14, %s509
      %p511 = scmp.lt.s32.totalorder %s27, 1
      %s512 = scalar_select %p511, %s27, 1
      %s513 = scalar_lea.vmem %s15, %s512
      %v514 = vlaneseq
      %v515 = vshrl.u32 %v514, 7
      %v516 = vadd.s32 %v515, 8
      %v517 = vlaneseq
      %v518 = vand.u32 %v517, 127
      %v519 = vsub.s32 %v515, 1
      %v520 = vsub.s32 %v516, 1
      %vm521 = vcmp.eq.s32.totalorder %v518, %v519
      %vm522 = vcmp.eq.s32.totalorder %v518, %v520
      %v523 = vsel %vm521, 1, 0
      %v524 = vsel %vm522, 1, 0
      %v525 = vcvt.s32.f32 %v523
      %v526 = vcvt.s32.f32 %v524
      %v527 = vadd.s32 %v515, 1
      %v528 = vadd.s32 %v516, 1
      %vm529 = vcmp.eq.s32.totalorder %v518, %v527
      %vm530 = vcmp.eq.s32.totalorder %v518, %v528
      %v531 = vsel %vm529, 1, 0
      %v532 = vsel %vm530, 1, 0
      %v533 = vcvt.s32.f32 %v531
      %v534 = vcvt.s32.f32 %v532
      %v535 = vld [vmem:[%s501] sm:$0xff]
      %v536 = vld [vmem:[%s501 + $0x8] sm:$0xff]
      %v537 = vld [vmem:[%s1] sm:$0xff]
      %v538 = vld [vmem:[%s1 + $0x8] sm:$0xff]
      %v539 = vld [vmem:[%s1 + $0x10] sm:$0xff]
      %v540 = vld [vmem:[%s1 + $0x18] sm:$0xff]
      %v541 = vld [vmem:[%s1 + $0x20] sm:$0xff]
      %v542 = vld [vmem:[%s1 + $0x28] sm:$0xff]
      %v543 = vld [vmem:[%s1 + $0x30] sm:$0xff]
      %v544 = vld [vmem:[%s1 + $0x38] sm:$0xff]
      %vm545 = vcmask 523264
      %v547 = vsel %vm545, %v535, 0
      %v550 = vsel %vm545, %v536, 0
      %552 = vmatpush.msra.mxu0 0.0
      %553 = vmatpush.msra.mxu0 0.0
      %554 = vmatpush.msra.mxu0 0.0
      %555 = vmatpush.msra.mxu0 0.0
      %556 = vmatpush.msra.mxu0 0.0
      %557 = vmatpush.msra.mxu0 0.0
      %558 = vmatpush.msra.mxu0 0.0
      %559 = vmatpush.msra.mxu0 0.0
      %560 = vmatpush.msra.mxu0 %v544
      %561 = vmatpush.msra.mxu0 %v543
      %562 = vmatpush.msra.mxu0 %v542
      %563 = vmatpush.msra.mxu0 %v541
      %564 = vmatpush.msra.mxu0 %v540
      %565 = vmatpush.msra.mxu0 %v539
      %566 = vmatpush.msra.mxu0 %v538
      %567 = vmatpush.msra.mxu0 %v537
      %568 = vmatmul.f32.gmra.mxu0 %v547
      %v569 = vpop.f32.mrf.mxu0
      %v570 = vadd.f32 0.0, %v569
      %571 = vmatmul.f32.gmra.mxu0 %v550
      %v572 = vpop.f32.mrf.mxu0
      %v573 = vadd.f32 0.0, %v572
      %574 = vdwg.mxu0
      %s575 = scalar_lea.vmem %s1, 64
      %v576 = vld [vmem:[%s575] sm:$0xff]
      %v577 = vld [vmem:[%s575 + $0x8] sm:$0xff]
      %v578 = vld [vmem:[%s575 + $0x10] sm:$0xff]
      %v579 = vld [vmem:[%s575 + $0x18] sm:$0xff]
      %v580 = vld [vmem:[%s575 + $0x20] sm:$0xff]
      %v581 = vld [vmem:[%s575 + $0x28] sm:$0xff]
      %v582 = vld [vmem:[%s575 + $0x30] sm:$0xff]
      %v583 = vld [vmem:[%s575 + $0x38] sm:$0xff]
      %s584 = scalar_lea.vmem %s1, 128
      %v585 = vld [vmem:[%s584] sm:$0xff]
      %v586 = vld [vmem:[%s584 + $0x8] sm:$0xff]
      %v587 = vld [vmem:[%s584 + $0x10] sm:$0xff]
      %v588 = vld [vmem:[%s584 + $0x18] sm:$0xff]
      %v589 = vld [vmem:[%s584 + $0x20] sm:$0xff]
      %v590 = vld [vmem:[%s584 + $0x28] sm:$0xff]
      %v591 = vld [vmem:[%s584 + $0x30] sm:$0xff]
      %v592 = vld [vmem:[%s584 + $0x38] sm:$0xff]
      %593 = vmatpush.msra.mxu0 0.0
      %594 = vmatpush.msra.mxu0 0.0
      %595 = vmatpush.msra.mxu0 0.0
      %596 = vmatpush.msra.mxu0 0.0
      %597 = vmatpush.msra.mxu0 0.0
      %598 = vmatpush.msra.mxu0 0.0
      %599 = vmatpush.msra.mxu0 0.0
      %600 = vmatpush.msra.mxu0 0.0
      %601 = vmatpush.msra.mxu0 %v592
      %602 = vmatpush.msra.mxu0 %v591
      %603 = vmatpush.msra.mxu0 %v590
      %604 = vmatpush.msra.mxu0 %v589
      %605 = vmatpush.msra.mxu0 %v588
      %606 = vmatpush.msra.mxu0 %v587
      %607 = vmatpush.msra.mxu0 %v586
      %608 = vmatpush.msra.mxu0 %v585
      %609 = vmatmul.f32.gmra.mxu0 %v547
      %v610 = vpop.f32.mrf.mxu0
      %v611 = vadd.f32 0.0, %v610
      %612 = vmatmul.f32.gmra.mxu0 %v550
      %v613 = vpop.f32.mrf.mxu0
      %v614 = vadd.f32 0.0, %v613
      %615 = vdwg.mxu0
      %vm616 = vcmask 130048
      %v618 = vsel %vm616, %v525, 0
      %v621 = vsel %vm616, %v526, 0
      %623 = vmatpush.msra.mxu0 0.0
      %624 = vmatpush.msra.mxu0 0.0
      %625 = vmatpush.msra.mxu0 0.0
      %626 = vmatpush.msra.mxu0 0.0
      %627 = vmatpush.msra.mxu0 0.0
      %628 = vmatpush.msra.mxu0 0.0
      %629 = vmatpush.msra.mxu0 0.0
      %630 = vmatpush.msra.mxu0 0.0
      %631 = vmatpush.msra.mxu0 0.0
      %632 = vmatpush.msra.mxu0 0.0
      %633 = vmatpush.msra.mxu0 0.0
      %634 = vmatpush.msra.mxu0 0.0
      %635 = vmatpush.msra.mxu0 0.0
      %636 = vmatpush.msra.mxu0 0.0
      %637 = vmatpush.msra.mxu0 %v573
      %638 = vmatpush.msra.mxu0 %v570
      %639 = vmatmul.f32.gmra.mxu0 %v618
      %v640 = vpop.f32.mrf.mxu0
      %v641 = vadd.f32 0.0, %v640
      %642 = vmatmul.f32.gmra.mxu0 %v621
      %v643 = vpop.f32.mrf.mxu0
      %v644 = vadd.f32 0.0, %v643
      %645 = vdwg.mxu0
      %646 = vmatpush.msra.mxu0 0.0
      %647 = vmatpush.msra.mxu0 0.0
      %648 = vmatpush.msra.mxu0 0.0
      %649 = vmatpush.msra.mxu0 0.0
      %650 = vmatpush.msra.mxu0 0.0
      %651 = vmatpush.msra.mxu0 0.0
      %652 = vmatpush.msra.mxu0 0.0
      %653 = vmatpush.msra.mxu0 0.0
      %654 = vmatpush.msra.mxu0 %v583
      %655 = vmatpush.msra.mxu0 %v582
      %656 = vmatpush.msra.mxu0 %v581
      %657 = vmatpush.msra.mxu0 %v580
      %658 = vmatpush.msra.mxu0 %v579
      %659 = vmatpush.msra.mxu0 %v578
      %660 = vmatpush.msra.mxu0 %v577
      %661 = vmatpush.msra.mxu0 %v576
      %662 = vmatmul.f32.gmra.mxu0 %v547
      %v663 = vpop.f32.mrf.mxu0
      %v664 = vadd.f32 %v641, %v663
      %665 = vmatmul.f32.gmra.mxu0 %v550
      %v666 = vpop.f32.mrf.mxu0
      %v667 = vadd.f32 %v644, %v666
      %668 = vdwg.mxu0
      %v670 = vsel %vm616, %v533, 0
      %v673 = vsel %vm616, %v534, 0
      %675 = vmatpush.msra.mxu0 0.0
      %676 = vmatpush.msra.mxu0 0.0
      %677 = vmatpush.msra.mxu0 0.0
      %678 = vmatpush.msra.mxu0 0.0
      %679 = vmatpush.msra.mxu0 0.0
      %680 = vmatpush.msra.mxu0 0.0
      %681 = vmatpush.msra.mxu0 0.0
      %682 = vmatpush.msra.mxu0 0.0
      %683 = vmatpush.msra.mxu0 0.0
      %684 = vmatpush.msra.mxu0 0.0
      %685 = vmatpush.msra.mxu0 0.0
      %686 = vmatpush.msra.mxu0 0.0
      %687 = vmatpush.msra.mxu0 0.0
      %688 = vmatpush.msra.mxu0 0.0
      %689 = vmatpush.msra.mxu0 %v614
      %690 = vmatpush.msra.mxu0 %v611
      %691 = vmatmul.f32.gmra.mxu0 %v670
      %v692 = vpop.f32.mrf.mxu0
      %v693 = vadd.f32 0.0, %v692
      %694 = vmatmul.f32.gmra.mxu0 %v673
      %v695 = vpop.f32.mrf.mxu0
      %v696 = vadd.f32 0.0, %v695
      %697 = vdwg.mxu0
      %v698 = vadd.f32 %v664, %v693
      %v699 = vadd.f32 %v667, %v696
      %v700 = vld [vmem:[%s2] sm:$0x1]
      %v702 = vperm.slane %v700, 0
      %v704 = vadd.f32 %v698, %v702
      %v705 = vadd.f32 %v699, %v702
      %v706 = vmax.f32 %v704, 0.0
      %v707 = vmax.f32 %v705, 0.0
      %v708 = vld [vmem:[%s9] sm:$0xff]
      %v709 = vld [vmem:[%s9 + $0x8] sm:$0xff]
      %v710 = vld [vmem:[%s9 + $0x10] sm:$0xff]
      %v711 = vld [vmem:[%s9 + $0x18] sm:$0xff]
      %v712 = vld [vmem:[%s9 + $0x20] sm:$0xff]
      %v713 = vld [vmem:[%s9 + $0x28] sm:$0xff]
      %v714 = vld [vmem:[%s9 + $0x30] sm:$0xff]
      %v715 = vld [vmem:[%s9 + $0x38] sm:$0xff]
      %v716 = vld [vmem:[%s9 + $0x40] sm:$0xff]
      %v717 = vld [vmem:[%s9 + $0x48] sm:$0xff]
      %v718 = vld [vmem:[%s9 + $0x50] sm:$0xff]
      %v719 = vld [vmem:[%s9 + $0x58] sm:$0xff]
      %v720 = vld [vmem:[%s9 + $0x60] sm:$0xff]
      %v721 = vld [vmem:[%s9 + $0x68] sm:$0xff]
      %v722 = vld [vmem:[%s9 + $0x70] sm:$0xff]
      %v723 = vld [vmem:[%s9 + $0x78] sm:$0xff]
      %724 = vmatpush.msra.mxu0 %v723
      %725 = vmatpush.msra.mxu0 %v722
      %726 = vmatpush.msra.mxu0 %v721
      %727 = vmatpush.msra.mxu0 %v720
      %728 = vmatpush.msra.mxu0 %v719
      %729 = vmatpush.msra.mxu0 %v718
      %730 = vmatpush.msra.mxu0 %v717
      %731 = vmatpush.msra.mxu0 %v716
      %732 = vmatpush.msra.mxu0 %v715
      %733 = vmatpush.msra.mxu0 %v714
      %734 = vmatpush.msra.mxu0 %v713
      %735 = vmatpush.msra.mxu0 %v712
      %736 = vmatpush.msra.mxu0 %v711
      %737 = vmatpush.msra.mxu0 %v710
      %738 = vmatpush.msra.mxu0 %v709
      %739 = vmatpush.msra.mxu0 %v708
      %740 = vmatmul.f32.gmra.mxu0 %v706
      %v741 = vpop.f32.mrf.mxu0
      %v742 = vadd.f32 0.0, %v741
      %743 = vmatmul.f32.gmra.mxu0 %v707
      %v744 = vpop.f32.mrf.mxu0
      %v745 = vadd.f32 0.0, %v744
      %746 = vdwg.mxu0
      %v747 = vld [vmem:[%s10] sm:$0xff]
      %v749 = vsel %vm616, %v747, 0
      %751 = vmatpush.msra.mxu0 0.0
      %752 = vmatpush.msra.mxu0 0.0
      %753 = vmatpush.msra.mxu0 0.0
      %754 = vmatpush.msra.mxu0 0.0
      %755 = vmatpush.msra.mxu0 0.0
      %756 = vmatpush.msra.mxu0 0.0
      %757 = vmatpush.msra.mxu0 0.0
      %758 = vmatpush.msra.mxu0 0.0
      %759 = vmatpush.msra.mxu0 0.0
      %760 = vmatpush.msra.mxu0 0.0
      %761 = vmatpush.msra.mxu0 0.0
      %762 = vmatpush.msra.mxu0 0.0
      %763 = vmatpush.msra.mxu0 0.0
      %764 = vmatpush.msra.mxu0 0.0
      %765 = vmatpush.msra.mxu0 %v745
      %766 = vmatpush.msra.mxu0 %v742
      %767 = vmatmul.f32.gmra.mxu0 %v749
      %v768 = vpop.f32.mrf.mxu0
      %v769 = vadd.f32 0.0, %v768
      %770 = vdwg.mxu0
      %v771 = vld [vmem:[%s3] sm:$0xff]
      %v772 = vld [vmem:[%s3 + $0x8] sm:$0xff]
      %v773 = vld [vmem:[%s3 + $0x10] sm:$0xff]
      %v774 = vld [vmem:[%s3 + $0x18] sm:$0xff]
      %v775 = vld [vmem:[%s3 + $0x20] sm:$0xff]
      %v776 = vld [vmem:[%s3 + $0x28] sm:$0xff]
      %v777 = vld [vmem:[%s3 + $0x30] sm:$0xff]
      %v778 = vld [vmem:[%s3 + $0x38] sm:$0xff]
      %v780 = vsel %vm545, %v769, 0
      %782 = vmatpush.msra.mxu0 0.0
      %783 = vmatpush.msra.mxu0 0.0
      %784 = vmatpush.msra.mxu0 0.0
      %785 = vmatpush.msra.mxu0 0.0
      %786 = vmatpush.msra.mxu0 0.0
      %787 = vmatpush.msra.mxu0 0.0
      %788 = vmatpush.msra.mxu0 0.0
      %789 = vmatpush.msra.mxu0 0.0
      %790 = vmatpush.msra.mxu0 %v778
      %791 = vmatpush.msra.mxu0 %v777
      %792 = vmatpush.msra.mxu0 %v776
      %793 = vmatpush.msra.mxu0 %v775
      %794 = vmatpush.msra.mxu0 %v774
      %795 = vmatpush.msra.mxu0 %v773
      %796 = vmatpush.msra.mxu0 %v772
      %797 = vmatpush.msra.mxu0 %v771
      %798 = vmatmul.f32.gmra.mxu0 %v780
      %v799 = vpop.f32.mrf.mxu0
      %v800 = vadd.f32 0.0, %v799
      %801 = vdwg.mxu0
      %s802 = scalar_lea.vmem %s3, 64
      %v803 = vld [vmem:[%s802] sm:$0xff]
      %v804 = vld [vmem:[%s802 + $0x8] sm:$0xff]
      %v805 = vld [vmem:[%s802 + $0x10] sm:$0xff]
      %v806 = vld [vmem:[%s802 + $0x18] sm:$0xff]
      %v807 = vld [vmem:[%s802 + $0x20] sm:$0xff]
      %v808 = vld [vmem:[%s802 + $0x28] sm:$0xff]
      %v809 = vld [vmem:[%s802 + $0x30] sm:$0xff]
      %v810 = vld [vmem:[%s802 + $0x38] sm:$0xff]
      %s811 = scalar_lea.vmem %s3, 128
      %v812 = vld [vmem:[%s811] sm:$0xff]
      %v813 = vld [vmem:[%s811 + $0x8] sm:$0xff]
      %v814 = vld [vmem:[%s811 + $0x10] sm:$0xff]
      %v815 = vld [vmem:[%s811 + $0x18] sm:$0xff]
      %v816 = vld [vmem:[%s811 + $0x20] sm:$0xff]
      %v817 = vld [vmem:[%s811 + $0x28] sm:$0xff]
      %v818 = vld [vmem:[%s811 + $0x30] sm:$0xff]
      %v819 = vld [vmem:[%s811 + $0x38] sm:$0xff]
      %820 = vmatpush.msra.mxu0 0.0
      %821 = vmatpush.msra.mxu0 0.0
      %822 = vmatpush.msra.mxu0 0.0
      %823 = vmatpush.msra.mxu0 0.0
      %824 = vmatpush.msra.mxu0 0.0
      %825 = vmatpush.msra.mxu0 0.0
      %826 = vmatpush.msra.mxu0 0.0
      %827 = vmatpush.msra.mxu0 0.0
      %828 = vmatpush.msra.mxu0 %v819
      %829 = vmatpush.msra.mxu0 %v818
      %830 = vmatpush.msra.mxu0 %v817
      %831 = vmatpush.msra.mxu0 %v816
      %832 = vmatpush.msra.mxu0 %v815
      %833 = vmatpush.msra.mxu0 %v814
      %834 = vmatpush.msra.mxu0 %v813
      %835 = vmatpush.msra.mxu0 %v812
      %836 = vmatmul.f32.gmra.mxu0 %v780
      %v837 = vpop.f32.mrf.mxu0
      %v838 = vadd.f32 0.0, %v837
      %839 = vdwg.mxu0
      %vm840 = vcmask 64512
      %v841 = vsel %vm840, %v525, 0
      %843 = vmatpush.msra.mxu0 0.0
      %844 = vmatpush.msra.mxu0 0.0
      %845 = vmatpush.msra.mxu0 0.0
      %846 = vmatpush.msra.mxu0 0.0
      %847 = vmatpush.msra.mxu0 0.0
      %848 = vmatpush.msra.mxu0 0.0
      %849 = vmatpush.msra.mxu0 0.0
      %850 = vmatpush.msra.mxu0 0.0
      %851 = vmatpush.msra.mxu0 0.0
      %852 = vmatpush.msra.mxu0 0.0
      %853 = vmatpush.msra.mxu0 0.0
      %854 = vmatpush.msra.mxu0 0.0
      %855 = vmatpush.msra.mxu0 0.0
      %856 = vmatpush.msra.mxu0 0.0
      %857 = vmatpush.msra.mxu0 0.0
      %858 = vmatpush.msra.mxu0 %v800
      %859 = vmatmul.f32.gmra.mxu0 %v841
      %v860 = vpop.f32.mrf.mxu0
      %v861 = vadd.f32 0.0, %v860
      %862 = vdwg.mxu0
      %863 = vmatpush.msra.mxu0 0.0
      %864 = vmatpush.msra.mxu0 0.0
      %865 = vmatpush.msra.mxu0 0.0
      %866 = vmatpush.msra.mxu0 0.0
      %867 = vmatpush.msra.mxu0 0.0
      %868 = vmatpush.msra.mxu0 0.0
      %869 = vmatpush.msra.mxu0 0.0
      %870 = vmatpush.msra.mxu0 0.0
      %871 = vmatpush.msra.mxu0 %v810
      %872 = vmatpush.msra.mxu0 %v809
      %873 = vmatpush.msra.mxu0 %v808
      %874 = vmatpush.msra.mxu0 %v807
      %875 = vmatpush.msra.mxu0 %v806
      %876 = vmatpush.msra.mxu0 %v805
      %877 = vmatpush.msra.mxu0 %v804
      %878 = vmatpush.msra.mxu0 %v803
      %879 = vmatmul.f32.gmra.mxu0 %v780
      %v880 = vpop.f32.mrf.mxu0
      %v881 = vadd.f32 %v861, %v880
      %882 = vdwg.mxu0
      %v883 = vsel %vm840, %v533, 0
      %885 = vmatpush.msra.mxu0 0.0
      %886 = vmatpush.msra.mxu0 0.0
      %887 = vmatpush.msra.mxu0 0.0
      %888 = vmatpush.msra.mxu0 0.0
      %889 = vmatpush.msra.mxu0 0.0
      %890 = vmatpush.msra.mxu0 0.0
      %891 = vmatpush.msra.mxu0 0.0
      %892 = vmatpush.msra.mxu0 0.0
      %893 = vmatpush.msra.mxu0 0.0
      %894 = vmatpush.msra.mxu0 0.0
      %895 = vmatpush.msra.mxu0 0.0
      %896 = vmatpush.msra.mxu0 0.0
      %897 = vmatpush.msra.mxu0 0.0
      %898 = vmatpush.msra.mxu0 0.0
      %899 = vmatpush.msra.mxu0 0.0
      %900 = vmatpush.msra.mxu0 %v838
      %901 = vmatmul.f32.gmra.mxu0 %v883
      %v902 = vpop.f32.mrf.mxu0
      %v903 = vadd.f32 0.0, %v902
      %904 = vdwg.mxu0
      %v905 = vadd.f32 %v881, %v903
      %v906 = vld [vmem:[%s4] sm:$0x1]
      %v908 = vperm.slane %v906, 0
      %v910 = vadd.f32 %v905, %v908
      %v911 = vmax.f32 %v910, 0.0
      %vm912 = vcmask 261120
      %913 = vst.msk [vmem:[%s510] sm:$0xff] %vm912, %v911
      %v914 = vld [vmem:[%s11] sm:$0xff]
      %v915 = vld [vmem:[%s11 + $0x8] sm:$0xff]
      %v916 = vld [vmem:[%s11 + $0x10] sm:$0xff]
      %v917 = vld [vmem:[%s11 + $0x18] sm:$0xff]
      %v919 = vsel %vm912, %v911, 0
      %921 = vmatpush.msra.mxu0 0.0
      %922 = vmatpush.msra.mxu0 0.0
      %923 = vmatpush.msra.mxu0 0.0
      %924 = vmatpush.msra.mxu0 0.0
      %925 = vmatpush.msra.mxu0 0.0
      %926 = vmatpush.msra.mxu0 0.0
      %927 = vmatpush.msra.mxu0 0.0
      %928 = vmatpush.msra.mxu0 0.0
      %929 = vmatpush.msra.mxu0 0.0
      %930 = vmatpush.msra.mxu0 0.0
      %931 = vmatpush.msra.mxu0 0.0
      %932 = vmatpush.msra.mxu0 0.0
      %933 = vmatpush.msra.mxu0 %v917
      %934 = vmatpush.msra.mxu0 %v916
      %935 = vmatpush.msra.mxu0 %v915
      %936 = vmatpush.msra.mxu0 %v914
      %937 = vmatmul.f32.gmra.mxu0 %v919
      %v938 = vpop.f32.mrf.mxu0
      %v939 = vadd.f32 0.0, %v938
      %940 = vdwg.mxu0
      %v941 = vld [vmem:[%s12] sm:$0xff]
      %v942 = vld [vmem:[%s12 + $0x8] sm:$0xff]
      %v944 = vsel %vm840, %v941, 0
      %v947 = vsel %vm840, %v942, 0
      %949 = vmatpush.msra.mxu0 0.0
      %950 = vmatpush.msra.mxu0 0.0
      %951 = vmatpush.msra.mxu0 0.0
      %952 = vmatpush.msra.mxu0 0.0
      %953 = vmatpush.msra.mxu0 0.0
      %954 = vmatpush.msra.mxu0 0.0
      %955 = vmatpush.msra.mxu0 0.0
      %956 = vmatpush.msra.mxu0 0.0
      %957 = vmatpush.msra.mxu0 0.0
      %958 = vmatpush.msra.mxu0 0.0
      %959 = vmatpush.msra.mxu0 0.0
      %960 = vmatpush.msra.mxu0 0.0
      %961 = vmatpush.msra.mxu0 0.0
      %962 = vmatpush.msra.mxu0 0.0
      %963 = vmatpush.msra.mxu0 0.0
      %964 = vmatpush.msra.mxu0 %v939
      %965 = vmatmul.f32.gmra.mxu0 %v944
      %v966 = vpop.f32.mrf.mxu0
      %v967 = vadd.f32 0.0, %v966
      %968 = vmatmul.f32.gmra.mxu0 %v947
      %v969 = vpop.f32.mrf.mxu0
      %v970 = vadd.f32 0.0, %v969
      %971 = vdwg.mxu0
      %v972 = vld [vmem:[%s5] sm:$0xff]
      %v973 = vld [vmem:[%s5 + $0x8] sm:$0xff]
      %v974 = vld [vmem:[%s5 + $0x10] sm:$0xff]
      %v975 = vld [vmem:[%s5 + $0x18] sm:$0xff]
      %v976 = vld [vmem:[%s5 + $0x20] sm:$0xff]
      %v977 = vld [vmem:[%s5 + $0x28] sm:$0xff]
      %v978 = vld [vmem:[%s5 + $0x30] sm:$0xff]
      %v979 = vld [vmem:[%s5 + $0x38] sm:$0xff]
      %v981 = vsel %vm545, %v967, 0
      %v984 = vsel %vm545, %v970, 0
      %986 = vmatpush.msra.mxu0 0.0
      %987 = vmatpush.msra.mxu0 0.0
      %988 = vmatpush.msra.mxu0 0.0
      %989 = vmatpush.msra.mxu0 0.0
      %990 = vmatpush.msra.mxu0 0.0
      %991 = vmatpush.msra.mxu0 0.0
      %992 = vmatpush.msra.mxu0 0.0
      %993 = vmatpush.msra.mxu0 0.0
      %994 = vmatpush.msra.mxu0 %v979
      %995 = vmatpush.msra.mxu0 %v978
      %996 = vmatpush.msra.mxu0 %v977
      %997 = vmatpush.msra.mxu0 %v976
      %998 = vmatpush.msra.mxu0 %v975
      %999 = vmatpush.msra.mxu0 %v974
      %1000 = vmatpush.msra.mxu0 %v973
      %1001 = vmatpush.msra.mxu0 %v972
      %1002 = vmatmul.f32.gmra.mxu0 %v981
      %v1003 = vpop.f32.mrf.mxu0
      %v1004 = vadd.f32 0.0, %v1003
      %1005 = vmatmul.f32.gmra.mxu0 %v984
      %v1006 = vpop.f32.mrf.mxu0
      %v1007 = vadd.f32 0.0, %v1006
      %1008 = vdwg.mxu0
      %s1009 = scalar_lea.vmem %s5, 64
      %v1010 = vld [vmem:[%s1009] sm:$0xff]
      %v1011 = vld [vmem:[%s1009 + $0x8] sm:$0xff]
      %v1012 = vld [vmem:[%s1009 + $0x10] sm:$0xff]
      %v1013 = vld [vmem:[%s1009 + $0x18] sm:$0xff]
      %v1014 = vld [vmem:[%s1009 + $0x20] sm:$0xff]
      %v1015 = vld [vmem:[%s1009 + $0x28] sm:$0xff]
      %v1016 = vld [vmem:[%s1009 + $0x30] sm:$0xff]
      %v1017 = vld [vmem:[%s1009 + $0x38] sm:$0xff]
      %s1018 = scalar_lea.vmem %s5, 128
      %v1019 = vld [vmem:[%s1018] sm:$0xff]
      %v1020 = vld [vmem:[%s1018 + $0x8] sm:$0xff]
      %v1021 = vld [vmem:[%s1018 + $0x10] sm:$0xff]
      %v1022 = vld [vmem:[%s1018 + $0x18] sm:$0xff]
      %v1023 = vld [vmem:[%s1018 + $0x20] sm:$0xff]
      %v1024 = vld [vmem:[%s1018 + $0x28] sm:$0xff]
      %v1025 = vld [vmem:[%s1018 + $0x30] sm:$0xff]
      %v1026 = vld [vmem:[%s1018 + $0x38] sm:$0xff]
      %1027 = vmatpush.msra.mxu0 0.0
      %1028 = vmatpush.msra.mxu0 0.0
      %1029 = vmatpush.msra.mxu0 0.0
      %1030 = vmatpush.msra.mxu0 0.0
      %1031 = vmatpush.msra.mxu0 0.0
      %1032 = vmatpush.msra.mxu0 0.0
      %1033 = vmatpush.msra.mxu0 0.0
      %1034 = vmatpush.msra.mxu0 0.0
      %1035 = vmatpush.msra.mxu0 %v1026
      %1036 = vmatpush.msra.mxu0 %v1025
      %1037 = vmatpush.msra.mxu0 %v1024
      %1038 = vmatpush.msra.mxu0 %v1023
      %1039 = vmatpush.msra.mxu0 %v1022
      %1040 = vmatpush.msra.mxu0 %v1021
      %1041 = vmatpush.msra.mxu0 %v1020
      %1042 = vmatpush.msra.mxu0 %v1019
      %1043 = vmatmul.f32.gmra.mxu0 %v981
      %v1044 = vpop.f32.mrf.mxu0
      %v1045 = vadd.f32 0.0, %v1044
      %1046 = vmatmul.f32.gmra.mxu0 %v984
      %v1047 = vpop.f32.mrf.mxu0
      %v1048 = vadd.f32 0.0, %v1047
      %1049 = vdwg.mxu0
      %1050 = vmatpush.msra.mxu0 0.0
      %1051 = vmatpush.msra.mxu0 0.0
      %1052 = vmatpush.msra.mxu0 0.0
      %1053 = vmatpush.msra.mxu0 0.0
      %1054 = vmatpush.msra.mxu0 0.0
      %1055 = vmatpush.msra.mxu0 0.0
      %1056 = vmatpush.msra.mxu0 0.0
      %1057 = vmatpush.msra.mxu0 0.0
      %1058 = vmatpush.msra.mxu0 0.0
      %1059 = vmatpush.msra.mxu0 0.0
      %1060 = vmatpush.msra.mxu0 0.0
      %1061 = vmatpush.msra.mxu0 0.0
      %1062 = vmatpush.msra.mxu0 0.0
      %1063 = vmatpush.msra.mxu0 0.0
      %1064 = vmatpush.msra.mxu0 %v1007
      %1065 = vmatpush.msra.mxu0 %v1004
      %1066 = vmatmul.f32.gmra.mxu0 %v618
      %v1067 = vpop.f32.mrf.mxu0
      %v1068 = vadd.f32 0.0, %v1067
      %1069 = vmatmul.f32.gmra.mxu0 %v621
      %v1070 = vpop.f32.mrf.mxu0
      %v1071 = vadd.f32 0.0, %v1070
      %1072 = vdwg.mxu0
      %1073 = vmatpush.msra.mxu0 0.0
      %1074 = vmatpush.msra.mxu0 0.0
      %1075 = vmatpush.msra.mxu0 0.0
      %1076 = vmatpush.msra.mxu0 0.0
      %1077 = vmatpush.msra.mxu0 0.0
      %1078 = vmatpush.msra.mxu0 0.0
      %1079 = vmatpush.msra.mxu0 0.0
      %1080 = vmatpush.msra.mxu0 0.0
      %1081 = vmatpush.msra.mxu0 %v1017
      %1082 = vmatpush.msra.mxu0 %v1016
      %1083 = vmatpush.msra.mxu0 %v1015
      %1084 = vmatpush.msra.mxu0 %v1014
      %1085 = vmatpush.msra.mxu0 %v1013
      %1086 = vmatpush.msra.mxu0 %v1012
      %1087 = vmatpush.msra.mxu0 %v1011
      %1088 = vmatpush.msra.mxu0 %v1010
      %1089 = vmatmul.f32.gmra.mxu0 %v981
      %v1090 = vpop.f32.mrf.mxu0
      %v1091 = vadd.f32 %v1068, %v1090
      %1092 = vmatmul.f32.gmra.mxu0 %v984
      %v1093 = vpop.f32.mrf.mxu0
      %v1094 = vadd.f32 %v1071, %v1093
      %1095 = vdwg.mxu0
      %1096 = vmatpush.msra.mxu0 0.0
      %1097 = vmatpush.msra.mxu0 0.0
      %1098 = vmatpush.msra.mxu0 0.0
      %1099 = vmatpush.msra.mxu0 0.0
      %1100 = vmatpush.msra.mxu0 0.0
      %1101 = vmatpush.msra.mxu0 0.0
      %1102 = vmatpush.msra.mxu0 0.0
      %1103 = vmatpush.msra.mxu0 0.0
      %1104 = vmatpush.msra.mxu0 0.0
      %1105 = vmatpush.msra.mxu0 0.0
      %1106 = vmatpush.msra.mxu0 0.0
      %1107 = vmatpush.msra.mxu0 0.0
      %1108 = vmatpush.msra.mxu0 0.0
      %1109 = vmatpush.msra.mxu0 0.0
      %1110 = vmatpush.msra.mxu0 %v1048
      %1111 = vmatpush.msra.mxu0 %v1045
      %1112 = vmatmul.f32.gmra.mxu0 %v670
      %v1113 = vpop.f32.mrf.mxu0
      %v1114 = vadd.f32 0.0, %v1113
      %1115 = vmatmul.f32.gmra.mxu0 %v673
      %v1116 = vpop.f32.mrf.mxu0
      %v1117 = vadd.f32 0.0, %v1116
      %1118 = vdwg.mxu0
      %v1119 = vadd.f32 %v1091, %v1114
      %v1120 = vadd.f32 %v1094, %v1117
      %v1121 = vld [vmem:[%s6] sm:$0x1]
      %v1123 = vperm.slane %v1121, 0
      %v1125 = vadd.f32 %v1119, %v1123
      %v1126 = vadd.f32 %v1120, %v1123
      %v1127 = vmax.f32 %v1125, 0.0
      %v1128 = vmax.f32 %v1126, 0.0
      %v1129 = vld [vmem:[%s7] sm:$0xff]
      %v1130 = vld [vmem:[%s7 + $0x8] sm:$0xff]
      %v1131 = vld [vmem:[%s7 + $0x10] sm:$0xff]
      %v1132 = vld [vmem:[%s7 + $0x18] sm:$0xff]
      %v1133 = vld [vmem:[%s7 + $0x20] sm:$0xff]
      %v1134 = vld [vmem:[%s7 + $0x28] sm:$0xff]
      %v1135 = vld [vmem:[%s7 + $0x30] sm:$0xff]
      %v1136 = vld [vmem:[%s7 + $0x38] sm:$0xff]
      %v1137 = vld [vmem:[%s7 + $0x40] sm:$0xff]
      %v1138 = vld [vmem:[%s7 + $0x48] sm:$0xff]
      %v1139 = vld [vmem:[%s7 + $0x50] sm:$0xff]
      %v1140 = vld [vmem:[%s7 + $0x58] sm:$0xff]
      %v1141 = vld [vmem:[%s7 + $0x60] sm:$0xff]
      %v1142 = vld [vmem:[%s7 + $0x68] sm:$0xff]
      %v1143 = vld [vmem:[%s7 + $0x70] sm:$0xff]
      %v1144 = vld [vmem:[%s7 + $0x78] sm:$0xff]
      %1145 = vmatpush.msra.mxu0 %v1144
      %1146 = vmatpush.msra.mxu0 %v1143
      %1147 = vmatpush.msra.mxu0 %v1142
      %1148 = vmatpush.msra.mxu0 %v1141
      %1149 = vmatpush.msra.mxu0 %v1140
      %1150 = vmatpush.msra.mxu0 %v1139
      %1151 = vmatpush.msra.mxu0 %v1138
      %1152 = vmatpush.msra.mxu0 %v1137
      %1153 = vmatpush.msra.mxu0 %v1136
      %1154 = vmatpush.msra.mxu0 %v1135
      %1155 = vmatpush.msra.mxu0 %v1134
      %1156 = vmatpush.msra.mxu0 %v1133
      %1157 = vmatpush.msra.mxu0 %v1132
      %1158 = vmatpush.msra.mxu0 %v1131
      %1159 = vmatpush.msra.mxu0 %v1130
      %1160 = vmatpush.msra.mxu0 %v1129
      %1161 = vmatmul.f32.gmra.mxu0 %v1127
      %v1162 = vpop.f32.mrf.mxu0
      %v1163 = vadd.f32 0.0, %v1162
      %1164 = vmatmul.f32.gmra.mxu0 %v1128
      %v1165 = vpop.f32.mrf.mxu0
      %v1166 = vadd.f32 0.0, %v1165
      %1167 = vdwg.mxu0
      %s1168 = scalar_lea.vmem %s7, 128
      %v1169 = vld [vmem:[%s1168] sm:$0xff]
      %v1170 = vld [vmem:[%s1168 + $0x8] sm:$0xff]
      %v1171 = vld [vmem:[%s1168 + $0x10] sm:$0xff]
      %v1172 = vld [vmem:[%s1168 + $0x18] sm:$0xff]
      %v1173 = vld [vmem:[%s1168 + $0x20] sm:$0xff]
      %v1174 = vld [vmem:[%s1168 + $0x28] sm:$0xff]
      %v1175 = vld [vmem:[%s1168 + $0x30] sm:$0xff]
      %v1176 = vld [vmem:[%s1168 + $0x38] sm:$0xff]
      %v1177 = vld [vmem:[%s1168 + $0x40] sm:$0xff]
      %v1178 = vld [vmem:[%s1168 + $0x48] sm:$0xff]
      %v1179 = vld [vmem:[%s1168 + $0x50] sm:$0xff]
      %v1180 = vld [vmem:[%s1168 + $0x58] sm:$0xff]
      %v1181 = vld [vmem:[%s1168 + $0x60] sm:$0xff]
      %v1182 = vld [vmem:[%s1168 + $0x68] sm:$0xff]
      %v1183 = vld [vmem:[%s1168 + $0x70] sm:$0xff]
      %v1184 = vld [vmem:[%s1168 + $0x78] sm:$0xff]
      %s1185 = scalar_lea.vmem %s7, 256
      %v1186 = vld [vmem:[%s1185] sm:$0xff]
      %v1187 = vld [vmem:[%s1185 + $0x8] sm:$0xff]
      %v1188 = vld [vmem:[%s1185 + $0x10] sm:$0xff]
      %v1189 = vld [vmem:[%s1185 + $0x18] sm:$0xff]
      %v1190 = vld [vmem:[%s1185 + $0x20] sm:$0xff]
      %v1191 = vld [vmem:[%s1185 + $0x28] sm:$0xff]
      %v1192 = vld [vmem:[%s1185 + $0x30] sm:$0xff]
      %v1193 = vld [vmem:[%s1185 + $0x38] sm:$0xff]
      %v1194 = vld [vmem:[%s1185 + $0x40] sm:$0xff]
      %v1195 = vld [vmem:[%s1185 + $0x48] sm:$0xff]
      %v1196 = vld [vmem:[%s1185 + $0x50] sm:$0xff]
      %v1197 = vld [vmem:[%s1185 + $0x58] sm:$0xff]
      %v1198 = vld [vmem:[%s1185 + $0x60] sm:$0xff]
      %v1199 = vld [vmem:[%s1185 + $0x68] sm:$0xff]
      %v1200 = vld [vmem:[%s1185 + $0x70] sm:$0xff]
      %v1201 = vld [vmem:[%s1185 + $0x78] sm:$0xff]
      %1202 = vmatpush.msra.mxu0 %v1201
      %1203 = vmatpush.msra.mxu0 %v1200
      %1204 = vmatpush.msra.mxu0 %v1199
      %1205 = vmatpush.msra.mxu0 %v1198
      %1206 = vmatpush.msra.mxu0 %v1197
      %1207 = vmatpush.msra.mxu0 %v1196
      %1208 = vmatpush.msra.mxu0 %v1195
      %1209 = vmatpush.msra.mxu0 %v1194
      %1210 = vmatpush.msra.mxu0 %v1193
      %1211 = vmatpush.msra.mxu0 %v1192
      %1212 = vmatpush.msra.mxu0 %v1191
      %1213 = vmatpush.msra.mxu0 %v1190
      %1214 = vmatpush.msra.mxu0 %v1189
      %1215 = vmatpush.msra.mxu0 %v1188
      %1216 = vmatpush.msra.mxu0 %v1187
      %1217 = vmatpush.msra.mxu0 %v1186
      %1218 = vmatmul.f32.gmra.mxu0 %v1127
      %v1219 = vpop.f32.mrf.mxu0
      %v1220 = vadd.f32 0.0, %v1219
      %1221 = vmatmul.f32.gmra.mxu0 %v1128
      %v1222 = vpop.f32.mrf.mxu0
      %v1223 = vadd.f32 0.0, %v1222
      %1224 = vdwg.mxu0
      %1225 = vmatpush.msra.mxu0 0.0
      %1226 = vmatpush.msra.mxu0 0.0
      %1227 = vmatpush.msra.mxu0 0.0
      %1228 = vmatpush.msra.mxu0 0.0
      %1229 = vmatpush.msra.mxu0 0.0
      %1230 = vmatpush.msra.mxu0 0.0
      %1231 = vmatpush.msra.mxu0 0.0
      %1232 = vmatpush.msra.mxu0 0.0
      %1233 = vmatpush.msra.mxu0 0.0
      %1234 = vmatpush.msra.mxu0 0.0
      %1235 = vmatpush.msra.mxu0 0.0
      %1236 = vmatpush.msra.mxu0 0.0
      %1237 = vmatpush.msra.mxu0 0.0
      %1238 = vmatpush.msra.mxu0 0.0
      %1239 = vmatpush.msra.mxu0 %v1166
      %1240 = vmatpush.msra.mxu0 %v1163
      %1241 = vmatmul.f32.gmra.mxu0 %v618
      %v1242 = vpop.f32.mrf.mxu0
      %v1243 = vadd.f32 0.0, %v1242
      %1244 = vmatmul.f32.gmra.mxu0 %v621
      %v1245 = vpop.f32.mrf.mxu0
      %v1246 = vadd.f32 0.0, %v1245
      %1247 = vdwg.mxu0
      %1248 = vmatpush.msra.mxu0 %v1184
      %1249 = vmatpush.msra.mxu0 %v1183
      %1250 = vmatpush.msra.mxu0 %v1182
      %1251 = vmatpush.msra.mxu0 %v1181
      %1252 = vmatpush.msra.mxu0 %v1180
      %1253 = vmatpush.msra.mxu0 %v1179
      %1254 = vmatpush.msra.mxu0 %v1178
      %1255 = vmatpush.msra.mxu0 %v1177
      %1256 = vmatpush.msra.mxu0 %v1176
      %1257 = vmatpush.msra.mxu0 %v1175
      %1258 = vmatpush.msra.mxu0 %v1174
      %1259 = vmatpush.msra.mxu0 %v1173
      %1260 = vmatpush.msra.mxu0 %v1172
      %1261 = vmatpush.msra.mxu0 %v1171
      %1262 = vmatpush.msra.mxu0 %v1170
      %1263 = vmatpush.msra.mxu0 %v1169
      %1264 = vmatmul.f32.gmra.mxu0 %v1127
      %v1265 = vpop.f32.mrf.mxu0
      %v1266 = vadd.f32 %v1243, %v1265
      %1267 = vmatmul.f32.gmra.mxu0 %v1128
      %v1268 = vpop.f32.mrf.mxu0
      %v1269 = vadd.f32 %v1246, %v1268
      %1270 = vdwg.mxu0
      %1271 = vmatpush.msra.mxu0 0.0
      %1272 = vmatpush.msra.mxu0 0.0
      %1273 = vmatpush.msra.mxu0 0.0
      %1274 = vmatpush.msra.mxu0 0.0
      %1275 = vmatpush.msra.mxu0 0.0
      %1276 = vmatpush.msra.mxu0 0.0
      %1277 = vmatpush.msra.mxu0 0.0
      %1278 = vmatpush.msra.mxu0 0.0
      %1279 = vmatpush.msra.mxu0 0.0
      %1280 = vmatpush.msra.mxu0 0.0
      %1281 = vmatpush.msra.mxu0 0.0
      %1282 = vmatpush.msra.mxu0 0.0
      %1283 = vmatpush.msra.mxu0 0.0
      %1284 = vmatpush.msra.mxu0 0.0
      %1285 = vmatpush.msra.mxu0 %v1223
      %1286 = vmatpush.msra.mxu0 %v1220
      %1287 = vmatmul.f32.gmra.mxu0 %v670
      %v1288 = vpop.f32.mrf.mxu0
      %v1289 = vadd.f32 0.0, %v1288
      %1290 = vmatmul.f32.gmra.mxu0 %v673
      %v1291 = vpop.f32.mrf.mxu0
      %v1292 = vadd.f32 0.0, %v1291
      %1293 = vdwg.mxu0
      %v1294 = vadd.f32 %v1266, %v1289
      %v1295 = vadd.f32 %v1269, %v1292
      %v1296 = vld [vmem:[%s8] sm:$0x1]
      %v1298 = vperm.slane %v1296, 0
      %v1300 = vadd.f32 %v1294, %v1298
      %v1301 = vadd.f32 %v1295, %v1298
      %v1302 = vxor.u32 %v1300, 2147483648
      %v1303 = vxor.u32 %v1301, 2147483648
      %v1304 = vmul.f32 %v1302, 1.442695
      %v1305 = vpow.pop %v1304
      %v1306 = vmul.f32 %v1303, 1.442695
      %v1307 = vpow.pop %v1306
      %v1308 = vadd.f32 %v1305, 1.0
      %v1309 = vadd.f32 %v1307, 1.0
      %v1310 = vrcp.pop %v1308
      %v1311 = vmul.f32 %v1308, %v1310
      %v1312 = vsub.f32 1.0, %v1311
      %v1313 = vmul.f32 %v1310, %v1312
      %v1314 = vadd.f32 %v1310, %v1313
      %vm1315 = vweird.f32 %v1308
      %vm1316 = vweird.f32 %v1310
      %vm1317 = vmor %vm1315, %vm1316
      %v1318 = vsel %vm1317, %v1310, %v1314
      %v1319 = vand.u32 2147483647, %v1308
      %vm1320 = vcmp.eq.f32.partialorder %v1319, 8.507059e+37
      %v1321 = vand.u32 %v1308, 2147483648
      %v1322 = vor.u32 1.1754944e-38, %v1321
      %v1323 = vsel %vm1320, %v1322, %v1318
      %v1324 = vmul.f32 1.0, %v1323
      %v1325 = vrcp.pop %v1309
      %v1326 = vmul.f32 %v1309, %v1325
      %v1327 = vsub.f32 1.0, %v1326
      %v1328 = vmul.f32 %v1325, %v1327
      %v1329 = vadd.f32 %v1325, %v1328
      %vm1330 = vweird.f32 %v1309
      %vm1331 = vweird.f32 %v1325
      %vm1332 = vmor %vm1330, %vm1331
      %v1333 = vsel %vm1332, %v1325, %v1329
      %v1334 = vand.u32 2147483647, %v1309
      %vm1335 = vcmp.eq.f32.partialorder %v1334, 8.507059e+37
      %v1336 = vand.u32 %v1309, 2147483648
      %v1337 = vor.u32 1.1754944e-38, %v1336
      %v1338 = vsel %vm1335, %v1337, %v1333
      %v1339 = vmul.f32 1.0, %v1338
      %1340 = vst.msk [vmem:[%s506] sm:$0xff] %vm545, %v1324
      %1341 = vst.msk [vmem:[%s506 + $0x8] sm:$0xff] %vm545, %v1339
      %v1342 = vand.u32 2147483647, %v1300
      %v1343 = vand.u32 2147483647, %v1301
      %v1344 = vsub.f32 0.0, %v1342
      %v1345 = vsub.f32 0.0, %v1343
      %v1346 = vmul.f32 %v1344, 1.442695
      %v1347 = vpow.pop %v1346
      %v1348 = vmul.f32 %v1345, 1.442695
      %v1349 = vpow.pop %v1348
      %v1350 = vadd.f32 %v1347, 1.0
      %v1351 = vlog2.pop %v1350
      %v1352 = vmul.f32 %v1351, 0.6931472
      %v1353 = vmul.f32 -0.5, %v1347
      %v1354 = vadd.f32 %v1353, 1.0
      %v1355 = vmul.f32 %v1354, %v1347
      %v1356 = vand.u32 2147483647, %v1347
      %vm1357 = vcmp.lt.f32.partialorder %v1356, 0.0004427343
      %v1358 = vsel %vm1357, %v1355, %v1352
      %v1359 = vadd.f32 %v1349, 1.0
      %v1360 = vlog2.pop %v1359
      %v1361 = vmul.f32 %v1360, 0.6931472
      %v1362 = vmul.f32 -0.5, %v1349
      %v1363 = vadd.f32 %v1362, 1.0
      %v1364 = vmul.f32 %v1363, %v1349
      %v1365 = vand.u32 2147483647, %v1349
      %vm1366 = vcmp.lt.f32.partialorder %v1365, 0.0004427343
      %v1367 = vsel %vm1366, %v1364, %v1361
      %v1368 = vsub.f32 0.0, %v1300
      %v1369 = vsub.f32 0.0, %v1301
      %v1370 = vmax.f32 %v1368, 0.0
      %v1371 = vmax.f32 %v1369, 0.0
      %v1372 = vadd.f32 %v1370, %v1358
      %v1373 = vadd.f32 %v1371, %v1367
      %v1374 = vmin.f32 %v1372, 100.0
      %v1375 = vmin.f32 %v1373, 100.0
      %v1376 = vmax.f32 %v1300, 0.0
      %v1377 = vmax.f32 %v1301, 0.0
      %v1378 = vadd.f32 %v1376, %v1358
      %v1379 = vadd.f32 %v1377, %v1367
      %v1380 = vmin.f32 %v1378, 100.0
      %v1381 = vmin.f32 %v1379, 100.0
      %v1382 = vmul.f32 %v535, %v1374
      %v1383 = vmul.f32 %v536, %v1375
      %v1384 = vsub.f32 1.0, %v535
      %v1385 = vsub.f32 1.0, %v536
      %v1386 = vmul.f32 %v1384, %v1380
      %v1387 = vmul.f32 %v1385, %v1381
      %v1388 = vadd.f32 %v1382, %v1386
      %v1389 = vadd.f32 %v1383, %v1387
      %v1390 = vsel %vm545, %v1388, 0.0
      %v1391 = vsel %vm545, %v1389, 0.0
      %v1392 = vadd.f32 %v1390, %v1391
      %1393 = vadd.xlane.f32.xlu0 %v1392
      %v1394 = vpop.xlane.xlu0 %1393
      %v1395 = vrot.slane %v1394, 4
      %v1396 = vadd.f32 %v1394, %v1395
      %v1397 = vrot.slane %v1396, 2
      %v1398 = vadd.f32 %v1396, %v1397
      %v1399 = vrot.slane %v1398, 1
      %v1400 = vadd.f32 %v1398, %v1399
      %s1401 = vtos %v1400
      %v1402 = vstv %s1401
      %1403 = vst [vmem:[%s513] sm:$0x1] %v1402
      %p1404 = scmp.lt.s32.totalorder %s27, 1
      %s1405 = scalar_select %p1404, %s27, 1
      %s1406 = smul.addr %s1405, 2
      %s1407 = smul.addr %s1406, 8
      %s1408 = scalar_lea.vmem %s13, %s1407
      %p1409 = scmp.lt.s32.totalorder %s27, 1
      %s1410 = scalar_select %p1409, %s27, 1
      %s1411 = smul.addr %s1410, 8
      %s1412 = scalar_lea.vmem %s14, %s1411
      %p1413 = scmp.lt.s32.totalorder %s27, 1
      %s1414 = scalar_select %p1413, %s27, 1
      %s1415 = scalar_lea.vmem %s15, %s1414
      // Predicated region
      $region73: #{composite_model_forward.1} parent=71 // pred_check
        %p1416 = pneg %p323
      $region74: #{composite_model_forward.1} parent=71 // pred_check_branch
        %1418 = sbr.rel (%p1416) target = $region76
      $region75: #{composite_model_forward.1} parent=71 // pred_region
        _
      $region76: #{composite_model_forward.1} parent=71 // pred_fallthru
        _
      // Predicated region
      $region77: #{composite_model_forward.1} parent=71 // pred_check
        %p1419 = pneg %p349
      $region78: #{composite_model_forward.1} parent=71 // pred_check_branch
        %1421 = sbr.rel (%p1419) target = $region80
      $region79: #{composite_model_forward.1} parent=71 // pred_region
        _
      $region80: #{composite_model_forward.1} parent=71 // pred_fallthru
        _
      // Predicated region
      $region81: #{composite_model_forward.1} parent=71 // pred_check
        %p1422 = pneg %p375
      $region82: #{composite_model_forward.1} parent=71 // pred_check_branch
        %1424 = sbr.rel (%p1422) target = $region84
      $region83: #{composite_model_forward.1} parent=71 // pred_region
        _
      $region84: #{composite_model_forward.1} parent=71 // pred_fallthru
        _
    $region72: #{composite_model_forward.1} parent=5 // pred_fallthru
      _
    %p1425 = scmp.le.s32.totalorder 2, %s22
    // Predicated region
    $region85: #{composite_model_forward.1} parent=5 // pred_check
      %p1426 = pneg %p1425
    $region86: #{composite_model_forward.1} parent=5 // pred_check_branch
      %1428 = sbr.rel (%p1426) target = $region88
    $region87: #{composite_model_forward.1} parent=5 // pred_region
      %s1429 = ssub.s32 %s22, 2
      // Predicated region
      $region89: #{composite_model_forward.1} parent=87 // pred_check
        %p1430 = pneg %p329
      $region90: #{composite_model_forward.1} parent=87 // pred_check_branch
        %1432 = sbr.rel (%p1430) target = $region92
      $region91: #{composite_model_forward.1} parent=87 // pred_region
        %p1433 = scmp.lt.s32.totalorder %s28, 1
        %s1434 = scalar_select %p1433, %s28, 1
        %s1435 = smul.addr %s1434, 2
        %s1436 = smul.addr %s1435, 8
        %s1437 = scalar_lea.vmem %s13, %s1436
      $region92: #{composite_model_forward.1} parent=87 // pred_fallthru
        _
      // Predicated region
      $region93: #{composite_model_forward.1} parent=87 // pred_check
        %p1438 = pneg %p355
      $region94: #{composite_model_forward.1} parent=87 // pred_check_branch
        %1440 = sbr.rel (%p1438) target = $region96
      $region95: #{composite_model_forward.1} parent=87 // pred_region
        %p1441 = scmp.lt.s32.totalorder %s28, 1
        %s1442 = scalar_select %p1441, %s28, 1
        %s1443 = smul.addr %s1442, 8
        %s1444 = scalar_lea.vmem %s14, %s1443
      $region96: #{composite_model_forward.1} parent=87 // pred_fallthru
        _
      // Predicated region
      $region97: #{composite_model_forward.1} parent=87 // pred_check
        %p1445 = pneg %p381
      $region98: #{composite_model_forward.1} parent=87 // pred_check_branch
        %1447 = sbr.rel (%p1445) target = $region100
      $region99: #{composite_model_forward.1} parent=87 // pred_region
        %p1448 = scmp.lt.s32.totalorder %s28, 1
        %s1449 = scalar_select %p1448, %s28, 1
        %s1450 = scalar_lea.vmem %s15, %s1449
      $region100: #{composite_model_forward.1} parent=87 // pred_fallthru
        _
    $region88: #{composite_model_forward.1} parent=5 // pred_fallthru
      _
  $region6: #{composite_model_forward.1} parent=0 // loop_footer
    %s26 = sadd.s32 1, %s22
  $region7: #{composite_model_forward.1} parent=0 // loop_footer_branch
    %21 = sbr.rel target = $region3
  $region8: #{composite_model_forward.1} parent=0 // loop_exit
    _

</llo_original>
